<compile_context>
chip_gen: v7x
topology: tpu7x:2x2x1
jax: 0.10.0
libtpu: 0.0.40
codegen_flags: <defaults>
</compile_context>

<pallas_src>
import numpy as np
import jax
import jax.numpy as jnp
from jax import lax
from jax.experimental import pallas as pl
from jax.experimental.pallas import tpu as pltpu


def _round_up(x, m):
    return ((x + m - 1) // m) * m


def _adaptive_pool_matrix(n_in, n_out):
    """Row i averages input positions [floor(i*n/o), ceil((i+1)*n/o)) -- exact
    PyTorch AdaptiveAvgPool2d binning."""
    mat = np.zeros((n_out, n_in), np.float32)
    for i in range(n_out):
        s = (i * n_in) // n_out
        e = -(-((i + 1) * n_in) // n_out)
        mat[i, s:e] = 1.0 / (e - s)
    return mat


def _routing_combined_weight(x, params, *, num_experts, out_channels, k):
    """route_func + expert combination (tiny, < 0.1% of the FLOPs): plain XLA.

    Returns the combined conv weight as a (k*k*c_in, out_channels) bf16 matrix
    whose row order (kh, kw, c) matches the kernel's im2col column order.
    """
    b, c_in, H, W = x.shape
    with jax.default_matmul_precision("highest"):
        a1 = jnp.mean(x, axis=(2, 3), keepdims=True)                 # GAP
        Ph = jnp.asarray(_adaptive_pool_matrix(H, 3))
        Pw = jnp.asarray(_adaptive_pool_matrix(W, 3))
        a3 = jnp.einsum('ph,qw,bchw->bcpq', Ph, Pw, x)               # 3x3 pool
        att = jnp.concatenate([jnp.broadcast_to(a1, a3.shape), a3], axis=1)
        y1 = jax.nn.relu(jnp.einsum('oc,bchw->bohw', params["w1"], att))
        y2 = jax.nn.relu(jnp.einsum('chw,bchw->bc', params["wdw"], y1))
        route = jax.nn.sigmoid(jnp.einsum('oc,bc->bo', params["w2"], y2))
        rw = route.reshape(num_experts, out_channels)
        wcomb = jnp.einsum('eo,eocij->ocij', rw, params["convs"])    # (O,C,k,k)
    wmat = jnp.transpose(wcomb, (2, 3, 1, 0)).reshape(k * k * c_in, out_channels)
    return wmat.astype(jnp.bfloat16)


def _make_conv_kernel(*, c_in, k, wp, tile_rows, wsz):
    """One grid step = one tile of flat output rows.

    Because the flat output row pitch equals the flat input row pitch (wp),
    every (kh, kw) tap of the conv is a pure shift of the input window; the
    taps are packed into a bf16 im2col scratch and contracted against the
    whole combined weight in a single big-K MXU matmul (f32 accumulation).
    """
    def kernel(x_ref, w_ref, o_ref, col_ref):
        start = pl.multiple_of(pl.program_id(0) * tile_rows, 16)
        # One aligned dynamic window load (bf16, no f32 round-trip).
        xwin = x_ref[pl.ds(start, wsz), :]                       # (wsz, c_in)
        # Pack the k*k shifted taps as column blocks of the im2col scratch.
        for kh in range(k):
            for kw in range(k):
                kk = kh * k + kw
                off = kh * wp + kw                               # pure shift
                col_ref[:, kk * c_in:(kk + 1) * c_in] = xwin[off:off + tile_rows, :]
        # Single fused contraction: K = k*k*c_in, accumulation inside the MXU.
        o_ref[...] = jnp.dot(col_ref[...], w_ref[...],
                             preferred_element_type=jnp.float32)
    return kernel


def dds_conv_exp_forward(x, params, *, kernel_size, stride, padding,
                         num_experts, out_channels, groups=1,
                         max_flat_rows=None):
    b, c_in, H, W = x.shape
    assert b == 1, "module's final .view is only shape-consistent for batch == 1"
    assert groups == 1  # TODO(synk): grouped main conv not implemented
    assert stride == 1  # TODO(synk): stride > 1 needs strided windows
    k = kernel_size
    p = padding

    Hp, Wp = H + 2 * p, W + 2 * p
    Ho, Wo = Hp - k + 1, Wp - k + 1
    kkc = k * k * c_in
    n_flat = Hp * Wp
    R = Ho * Wp                                  # flat output rows (pitch Wp)
    halo = (k - 1) * (Wp + 1)

    # ---- routing + expert combination (tiny, plain XLA) ---------------------
    wmat = _routing_combined_weight(x, params, num_experts=num_experts,
                                    out_channels=out_channels, k=k)

    # ---- generation-aware VMEM budget ---------------------------------------
    try:
        vmem_cap = int(getattr(pltpu.get_tpu_info(), "vmem_capacity_bytes",
                               64 * 2 ** 20))
    except Exception:
        vmem_cap = 64 * 2 ** 20
    vmem_limit = int(0.75 * vmem_cap)            # ~48 MiB v7x, ~96 MiB v5e/v6e

    # ---- tile size: big row tiles, no divisibility requirement --------------
    if max_flat_rows is not None:
        T = max(16, (int(max_flat_rows) // 16) * 16)
    else:
        per_row = kkc * 2 + out_channels * 4 * 2 + c_in * 2 * 3 + out_channels * 4
        resident = (2 * (n_flat + halo + 64) * c_in * 2      # x (double buffered)
                    + 4 * kkc * out_channels * 2             # combined weight
                    + (2 << 20))                             # headroom
        avail = max(vmem_limit - resident, 4 << 20)
        hard_cap = 16384 if vmem_cap >= 100 * 2 ** 20 else 8192
        T = max(16, min((avail // 2) // per_row, hard_cap))
        T = (T // 16) * 16
    T = min(T, _round_up(R, 16))
    num_tiles = -(-R // T)
    wsz = _round_up(T + halo, 16)                # aligned per-tile window size
    n_pad = (num_tiles - 1) * T + wsz            # covers every window read
    out_rows = num_tiles * T                     # padded tail sliced off below

    # ---- host glue: flat spatial-major x (single pass, no host im2col) ------
    xpad = jnp.pad(x[0].astype(jnp.float32), ((0, 0), (p, p), (p, p)))
    xflat = jnp.transpose(xpad, (1, 2, 0)).reshape(n_flat, c_in)
    xflat = jnp.pad(xflat, ((0, n_pad - n_flat), (0, 0))).astype(jnp.bfloat16)

    kernel = _make_conv_kernel(c_in=c_in, k=k, wp=Wp, tile_rows=T, wsz=wsz)

    flops = 2 * out_rows * kkc * out_channels
    bytes_accessed = (n_pad * c_in * 2 + kkc * out_channels * 2
                      + out_rows * out_channels * 4)

    outw = pl.pallas_call(
        kernel,
        out_shape=jax.ShapeDtypeStruct((out_rows, out_channels), jnp.float32),
        grid=(num_tiles,),
        in_specs=[
            # TODO(synk): for huge images switch x to pl.ANY + windowed DMA.
            pl.BlockSpec((n_pad, c_in), lambda j: (0, 0)),        # resident x
            pl.BlockSpec((kkc, out_channels), lambda j: (0, 0)),  # resident W
        ],
        out_specs=pl.BlockSpec((T, out_channels), lambda j: (j, 0)),
        scratch_shapes=[pltpu.VMEM((T, kkc), jnp.bfloat16)],      # im2col tile
        compiler_params=pltpu.CompilerParams(
            # no cross-step state -> row-tile axis may be megacore-sharded
            dimension_semantics=("parallel",),
            vmem_limit_bytes=vmem_limit),
        cost_estimate=pl.CostEstimate(flops=int(flops), transcendentals=0,
                                      bytes_accessed=int(bytes_accessed)),
    )(xflat, wmat)

    # drop the padded tail rows and the (k-1) garbage columns of each flat row
    out = outw[:R].reshape(Ho, Wp, out_channels)[:, :Wo, :]
    return jnp.transpose(out, (2, 0, 1))[None]


def reference_forward(x, params, *, kernel_size, stride, padding,
                      num_experts, out_channels):
    """Pure-JAX reference reproducing the PyTorch forward (b == 1)."""
    b, c_in, H, W = x.shape
    with jax.default_matmul_precision("highest"):
        a1 = jnp.mean(x, axis=(2, 3), keepdims=True)

        def bins(n):
            return [((i * n) // 3, -(-((i + 1) * n) // 3)) for i in range(3)]

        a3 = jnp.stack([
            jnp.stack([jnp.mean(x[:, :, sh:eh, sw:ew], axis=(2, 3))
                       for (sw, ew) in bins(W)], axis=-1)
            for (sh, eh) in bins(H)], axis=-2)            # (b, c, 3, 3)
        att = jnp.concatenate([jnp.broadcast_to(a1, a3.shape), a3], axis=1)
        y1 = jax.nn.relu(jnp.einsum('oc,bchw->bohw', params["w1"], att))
        y2 = jax.nn.relu(jnp.einsum('chw,bchw->bc', params["wdw"], y1))
        route = jax.nn.sigmoid(jnp.einsum('oc,bc->bo', params["w2"], y2))
        rw = route.reshape(b, num_experts, out_channels)
        wcomb = jnp.einsum('beo,eocij->ocij', rw, params["convs"])
        out = lax.conv_general_dilated(
            x, wcomb, window_strides=(stride, stride),
            padding=((padding, padding), (padding, padding)),
            dimension_numbers=('NCHW', 'OIHW', 'NCHW'))
    return out


def _run_case(*, in_channels, out_channels, kernel_size, num_experts,
              reduction, stride, padding, H, W, seed, max_flat_rows=None):
    sq = max(in_channels // reduction, reduction)
    key = jax.random.PRNGKey(seed)
    k1, k2, k3, k4, kx = jax.random.split(key, 5)
    params = {
        "w1": 0.1 * jax.random.normal(k1, (sq, 2 * in_channels), jnp.float32),
        "wdw": 0.1 * jax.random.normal(k2, (sq, 3, 3), jnp.float32),
        "w2": 0.1 * jax.random.normal(k3, (num_experts * out_channels, sq),
                                      jnp.float32),
        "convs": 0.1 * jax.random.normal(
            k4, (num_experts, out_channels, in_channels, kernel_size,
                 kernel_size), jnp.float32),
    }
    x = jax.random.normal(kx, (1, in_channels, H, W), jnp.float32)

    out = dds_conv_exp_forward(
        x, params, kernel_size=kernel_size, stride=stride, padding=padding,
        num_experts=num_experts, out_channels=out_channels, groups=1,
        max_flat_rows=max_flat_rows)
    out = jax.block_until_ready(out)

    ref = reference_forward(
        x, params, kernel_size=kernel_size, stride=stride, padding=padding,
        num_experts=num_experts, out_channels=out_channels)
    assert out.shape == ref.shape
    # bf16 MXU operands with f32 accumulation -> relaxed (but meaningful) tol.
    np.testing.assert_allclose(np.asarray(out), np.asarray(ref),
                               rtol=2e-2, atol=2e-2)


if __name__ == "__main__":
    # small config (single row tile, grid == 1)
    _run_case(in_channels=16, out_channels=16, kernel_size=3, num_experts=3,
              reduction=16, stride=1, padding=1, H=16, W=16, seed=0)
    # larger config (still one tile with the default budget)
    _run_case(in_channels=24, out_channels=32, kernel_size=3, num_experts=3,
              reduction=16, stride=1, padding=1, H=40, W=40, seed=1)
    # same config with a small forced tile -> exercises the multi-step grid,
    # the padded output tail and the "parallel" row-tile axis
    _run_case(in_channels=24, out_channels=32, kernel_size=3, num_experts=3,
              reduction=16, stride=1, padding=1, H=40, W=40, seed=1,
              max_flat_rows=512)
    print("KERNEL_OK")
</pallas_src>

<mosaic_0001>
module attributes {stable_mosaic.version = 11 : i64} {
  func.func @kernel(%arg0: i32, %arg1: memref<336x16xbf16, #tpu.memory_space<vmem>>, %arg2: memref<144x16xbf16, #tpu.memory_space<vmem>>, %arg3: memref<288x16xf32, #tpu.memory_space<vmem>>, %arg4: memref<288x144xbf16, #tpu.memory_space<vmem>>) attributes {dimension_semantics = [#tpu.dimension_semantics<parallel>], iteration_bounds = array<i64: 1>, scalar_prefetch = 0 : i64, scratch_operands = 1 : i64, tpu.core_type = #tpu.core_type<tc>, window_params = [{pipeline_mode = #tpu.pipeline_mode<synchronous>, transform_indices = @transform_0, window_bounds = array<i64: 336, 16>}, {pipeline_mode = #tpu.pipeline_mode<synchronous>, transform_indices = @transform_1, window_bounds = array<i64: 144, 16>}, {transform_indices = @transform_2, window_bounds = array<i64: 288, 16>}]} {
    %c288_i32 = arith.constant 288 : i32
    %0 = arith.muli %arg0, %c288_i32 : i32
    %1 = tpu.assume_multiple %0, 16 : i32
    %2 = arith.index_cast %1 : i32 to index
    %c0 = arith.constant 0 : index
    %3 = vector.load %arg1[%2, %c0] : memref<336x16xbf16, #tpu.memory_space<vmem>>, vector<336x16xbf16>
    %4 = vector.extract_strided_slice %3 {offsets = [0, 0], sizes = [288, 16], strides = [1, 1]} : vector<336x16xbf16> to vector<288x16xbf16>
    %c0_0 = arith.constant 0 : index
    %c0_1 = arith.constant 0 : index
    %5 = vector.load %arg4[%c0_0, %c0_1] : memref<288x144xbf16, #tpu.memory_space<vmem>>, vector<288x16xbf16>
    tpu.vector_store %arg4[%c0_0, %c0_1], %4 {strides = array<i32>} : memref<288x144xbf16, #tpu.memory_space<vmem>>, vector<288x16xbf16>,
    %6 = vector.extract_strided_slice %3 {offsets = [1, 0], sizes = [288, 16], strides = [1, 1]} : vector<336x16xbf16> to vector<288x16xbf16>
    %c0_2 = arith.constant 0 : index
    %c16 = arith.constant 16 : index
    %7 = vector.load %arg4[%c0_2, %c16] : memref<288x144xbf16, #tpu.memory_space<vmem>>, vector<288x16xbf16>
    tpu.vector_store %arg4[%c0_2, %c16], %6 {strides = array<i32>} : memref<288x144xbf16, #tpu.memory_space<vmem>>, vector<288x16xbf16>,
    %8 = vector.extract_strided_slice %3 {offsets = [2, 0], sizes = [288, 16], strides = [1, 1]} : vector<336x16xbf16> to vector<288x16xbf16>
    %c0_3 = arith.constant 0 : index
    %c32 = arith.constant 32 : index
    %9 = vector.load %arg4[%c0_3, %c32] : memref<288x144xbf16, #tpu.memory_space<vmem>>, vector<288x16xbf16>
    tpu.vector_store %arg4[%c0_3, %c32], %8 {strides = array<i32>} : memref<288x144xbf16, #tpu.memory_space<vmem>>, vector<288x16xbf16>,
    %10 = vector.extract_strided_slice %3 {offsets = [18, 0], sizes = [288, 16], strides = [1, 1]} : vector<336x16xbf16> to vector<288x16xbf16>
    %c0_4 = arith.constant 0 : index
    %c48 = arith.constant 48 : index
    %11 = vector.load %arg4[%c0_4, %c48] : memref<288x144xbf16, #tpu.memory_space<vmem>>, vector<288x16xbf16>
    tpu.vector_store %arg4[%c0_4, %c48], %10 {strides = array<i32>} : memref<288x144xbf16, #tpu.memory_space<vmem>>, vector<288x16xbf16>,
    %12 = vector.extract_strided_slice %3 {offsets = [19, 0], sizes = [288, 16], strides = [1, 1]} : vector<336x16xbf16> to vector<288x16xbf16>
    %c0_5 = arith.constant 0 : index
    %c64 = arith.constant 64 : index
    %13 = vector.load %arg4[%c0_5, %c64] : memref<288x144xbf16, #tpu.memory_space<vmem>>, vector<288x16xbf16>
    tpu.vector_store %arg4[%c0_5, %c64], %12 {strides = array<i32>} : memref<288x144xbf16, #tpu.memory_space<vmem>>, vector<288x16xbf16>,
    %14 = vector.extract_strided_slice %3 {offsets = [20, 0], sizes = [288, 16], strides = [1, 1]} : vector<336x16xbf16> to vector<288x16xbf16>
    %c0_6 = arith.constant 0 : index
    %c80 = arith.constant 80 : index
    %15 = vector.load %arg4[%c0_6, %c80] : memref<288x144xbf16, #tpu.memory_space<vmem>>, vector<288x16xbf16>
    tpu.vector_store %arg4[%c0_6, %c80], %14 {strides = array<i32>} : memref<288x144xbf16, #tpu.memory_space<vmem>>, vector<288x16xbf16>,
    %16 = vector.extract_strided_slice %3 {offsets = [36, 0], sizes = [288, 16], strides = [1, 1]} : vector<336x16xbf16> to vector<288x16xbf16>
    %c0_7 = arith.constant 0 : index
    %c96 = arith.constant 96 : index
    %17 = vector.load %arg4[%c0_7, %c96] : memref<288x144xbf16, #tpu.memory_space<vmem>>, vector<288x16xbf16>
    tpu.vector_store %arg4[%c0_7, %c96], %16 {strides = array<i32>} : memref<288x144xbf16, #tpu.memory_space<vmem>>, vector<288x16xbf16>,
    %18 = vector.extract_strided_slice %3 {offsets = [37, 0], sizes = [288, 16], strides = [1, 1]} : vector<336x16xbf16> to vector<288x16xbf16>
    %c0_8 = arith.constant 0 : index
    %c112 = arith.constant 112 : index
    %19 = vector.load %arg4[%c0_8, %c112] : memref<288x144xbf16, #tpu.memory_space<vmem>>, vector<288x16xbf16>
    tpu.vector_store %arg4[%c0_8, %c112], %18 {strides = array<i32>} : memref<288x144xbf16, #tpu.memory_space<vmem>>, vector<288x16xbf16>,
    %20 = vector.extract_strided_slice %3 {offsets = [38, 0], sizes = [288, 16], strides = [1, 1]} : vector<336x16xbf16> to vector<288x16xbf16>
    %c0_9 = arith.constant 0 : index
    %c128 = arith.constant 128 : index
    %21 = vector.load %arg4[%c0_9, %c128] : memref<288x144xbf16, #tpu.memory_space<vmem>>, vector<288x16xbf16>
    tpu.vector_store %arg4[%c0_9, %c128], %20 {strides = array<i32>} : memref<288x144xbf16, #tpu.memory_space<vmem>>, vector<288x16xbf16>,
    %c0_10 = arith.constant 0 : index
    %c0_11 = arith.constant 0 : index
    %22 = vector.load %arg4[%c0_10, %c0_11] : memref<288x144xbf16, #tpu.memory_space<vmem>>, vector<288x144xbf16>
    %c0_12 = arith.constant 0 : index
    %c0_13 = arith.constant 0 : index
    %23 = vector.load %arg2[%c0_12, %c0_13] : memref<144x16xbf16, #tpu.memory_space<vmem>>, vector<144x16xbf16>
    %cst = arith.constant dense<0.000000e+00> : vector<288x16xf32>
    %24 = tpu.matmul %22, %23, %cst {dimension_numbers = #tpu.dot_dimension_numbers<[1], [0], [0], [1], [0, 0, 1, 1], [], []>} : vector<288x144xbf16>, vector<144x16xbf16>, vector<288x16xf32> -> vector<288x16xf32>
    %c0_14 = arith.constant 0 : index
    %c0_15 = arith.constant 0 : index
    %25 = vector.load %arg3[%c0_14, %c0_15] : memref<288x16xf32, #tpu.memory_space<vmem>>, vector<288x16xf32>
    tpu.vector_store %arg3[%c0_14, %c0_15], %24 {strides = array<i32>} : memref<288x16xf32, #tpu.memory_space<vmem>>, vector<288x16xf32>,
    return
  }
  func.func @transform_0(%arg0: i32) -> (i32, i32) {
    %c0_i32 = arith.constant 0 : i32
    %c0_i32_0 = arith.constant 0 : i32
    %c0_i32_1 = arith.constant 0 : i32
    return %c0_i32, %c0_i32_0 : i32, i32
  }
  func.func @transform_1(%arg0: i32) -> (i32, i32) {
    %c0_i32 = arith.constant 0 : i32
    %c0_i32_0 = arith.constant 0 : i32
    %c0_i32_1 = arith.constant 0 : i32
    return %c0_i32, %c0_i32_0 : i32, i32
  }
  func.func @transform_2(%arg0: i32) -> (i32, i32) {
    %c0_i32 = arith.constant 0 : i32
    %c0_i32_0 = arith.constant 0 : i32
    return %arg0, %c0_i32 : i32, i32
  }
}

</mosaic_0001>

<llo_original>
// kernel: tpu_custom_call.1
$region0: #{tpu_custom_call.1}
  #allocation0 [shape = 'u32[]', space=smem, size = 0x4, offset = 0x4, fixed_abs, tag = 'smem constant byte address 0x4 - core index']
  #allocation1 [shape = 'u32[144,128]{1,0:T(1,128)}', space=vmem, size = 0x12000, scoped, tag = 'internal scratch']
  #allocation2 [shape = 'bf16[288,144]{1,0:T(16,128)(2,1)}', space=vmem, size = 0x24000, scoped, tag = 'scratch operand']
  %s0 = inlined_call_operand.vmem [shape: bf16[336,16], index: 0, kind: input, shape index: {}]
  %s1 = inlined_call_operand.vmem [shape: bf16[144,16], index: 1, kind: input, shape index: {}]
  %s2 = inlined_call_operand.vmem [shape: f32[288,16], index: 2, kind: output, shape index: {}]
  %s3 = sld [smem:[#allocation0]]
  $region18: #{tpu_custom_call.1} parent=0
    _
  %s5 = ssub.s32 1, %s3
  %s6 = scalar_select 0, %s5, %s3
  // Predicated region
  $region2: #{tpu_custom_call.1} parent=0 // pred_check
    _
  $region3: #{tpu_custom_call.1} parent=0 // pred_check_branch
    %8 = sbr.rel (0) target = $region5
  $region4: #{tpu_custom_call.1} parent=0 // pred_region
    _
  $region5: #{tpu_custom_call.1} parent=0 // pred_fallthru
    _
  // Predicated region
  $region6: #{tpu_custom_call.1} parent=0 // pred_check
    _
  $region7: #{tpu_custom_call.1} parent=0 // pred_check_branch
    %10 = sbr.rel (0) target = $region9
  $region8: #{tpu_custom_call.1} parent=0 // pred_region
    _
  $region9: #{tpu_custom_call.1} parent=0 // pred_fallthru
    _
  %s12 = smul.u32 0, 288
  %s13 = sshra.s32 %s12, 3
  %s14 = sand.u32 %s12, 7
  %s15 = smul.addr %s13, 4
  %s16 = scalar_lea.vmem %s0, %s15
  %v17 = vld [vmem:[%s16] sm:$0xf]
  %v18 = vld [vmem:[%s16 + $0x4] sm:$0xf]
  %v19 = vld [vmem:[%s16 + $0x8] sm:$0xf]
  %v20 = vld [vmem:[%s16 + $0xc] sm:$0xf]
  %v21 = vld [vmem:[%s16 + $0x10] sm:$0xf]
  %v22 = vld [vmem:[%s16 + $0x14] sm:$0xf]
  %v23 = vld [vmem:[%s16 + $0x18] sm:$0xf]
  %v24 = vld [vmem:[%s16 + $0x1c] sm:$0xf]
  %v25 = vld [vmem:[%s16 + $0x20] sm:$0xf]
  %v26 = vld [vmem:[%s16 + $0x24] sm:$0xf]
  %v27 = vld [vmem:[%s16 + $0x28] sm:$0xf]
  %v28 = vld [vmem:[%s16 + $0x2c] sm:$0xf]
  %v29 = vld [vmem:[%s16 + $0x30] sm:$0xf]
  %v30 = vld [vmem:[%s16 + $0x34] sm:$0xf]
  %v31 = vld [vmem:[%s16 + $0x38] sm:$0xf]
  %v32 = vld [vmem:[%s16 + $0x3c] sm:$0xf]
  %v33 = vld [vmem:[%s16 + $0x40] sm:$0xf]
  %v34 = vld [vmem:[%s16 + $0x44] sm:$0xf]
  %v35 = vld [vmem:[%s16 + $0x48] sm:$0xf]
  %v36 = vld [vmem:[%s16 + $0x4c] sm:$0xf]
  %v37 = vld [vmem:[%s16 + $0x50] sm:$0xf]
  %v38 = vld [vmem:[%s16 + $0x54] sm:$0xf]
  %v39 = vld [vmem:[%s16 + $0x58] sm:$0xf]
  %v40 = vld [vmem:[%s16 + $0x5c] sm:$0xf]
  %v41 = vld [vmem:[%s16 + $0x60] sm:$0xf]
  %v42 = vld [vmem:[%s16 + $0x64] sm:$0xf]
  %v43 = vld [vmem:[%s16 + $0x68] sm:$0xf]
  %v44 = vld [vmem:[%s16 + $0x6c] sm:$0xf]
  %v45 = vld [vmem:[%s16 + $0x70] sm:$0xf]
  %v46 = vld [vmem:[%s16 + $0x74] sm:$0xf]
  %v47 = vld [vmem:[%s16 + $0x78] sm:$0xf]
  %v48 = vld [vmem:[%s16 + $0x7c] sm:$0xf]
  %v49 = vld [vmem:[%s16 + $0x80] sm:$0xf]
  %v50 = vld [vmem:[%s16 + $0x84] sm:$0xf]
  %v51 = vld [vmem:[%s16 + $0x88] sm:$0xf]
  %v52 = vld [vmem:[%s16 + $0x8c] sm:$0xf]
  %v53 = vld [vmem:[%s16 + $0x90] sm:$0xf]
  %v54 = vld [vmem:[%s16 + $0x94] sm:$0xf]
  %v55 = vld [vmem:[%s16 + $0x98] sm:$0xf]
  %v56 = vld [vmem:[%s16 + $0x9c] sm:$0xf]
  %v57 = vld [vmem:[%s16 + $0xa0] sm:$0xf]
  %v94 = vunpack.c.l.b16 %v17
  %v95 = vunpack.c.l.b16 %v18
  %v96 = vunpack.c.l.b16 %v19
  %v97 = vunpack.c.l.b16 %v20
  %v98 = vunpack.c.l.b16 %v21
  %v99 = vunpack.c.l.b16 %v22
  %v100 = vunpack.c.l.b16 %v23
  %v101 = vunpack.c.l.b16 %v24
  %v102 = vunpack.c.l.b16 %v25
  %v103 = vunpack.c.l.b16 %v26
  %v104 = vunpack.c.l.b16 %v27
  %v105 = vunpack.c.l.b16 %v28
  %v106 = vunpack.c.l.b16 %v29
  %v107 = vunpack.c.l.b16 %v30
  %v108 = vunpack.c.l.b16 %v31
  %v109 = vunpack.c.l.b16 %v32
  %v110 = vunpack.c.l.b16 %v33
  %v111 = vunpack.c.l.b16 %v34
  %v112 = vunpack.c.l.b16 %v35
  %v113 = vunpack.c.l.b16 %v36
  %v114 = vunpack.c.l.b16 %v37
  %v115 = vunpack.c.l.b16 %v38
  %v116 = vunpack.c.l.b16 %v39
  %v117 = vunpack.c.l.b16 %v40
  %v118 = vunpack.c.l.b16 %v41
  %v119 = vunpack.c.l.b16 %v42
  %v120 = vunpack.c.l.b16 %v43
  %v121 = vunpack.c.l.b16 %v44
  %v122 = vunpack.c.l.b16 %v45
  %v123 = vunpack.c.l.b16 %v46
  %v124 = vunpack.c.l.b16 %v47
  %v125 = vunpack.c.l.b16 %v48
  %v126 = vunpack.c.l.b16 %v49
  %v127 = vunpack.c.l.b16 %v50
  %v128 = vunpack.c.l.b16 %v51
  %v129 = vunpack.c.l.b16 %v52
  %v130 = vpack.c.b16 %v95, %v94
  %v131 = vpack.c.b16 %v97, %v96
  %v132 = vpack.c.b16 %v99, %v98
  %v133 = vpack.c.b16 %v101, %v100
  %v134 = vpack.c.b16 %v103, %v102
  %v135 = vpack.c.b16 %v105, %v104
  %v136 = vpack.c.b16 %v107, %v106
  %v137 = vpack.c.b16 %v109, %v108
  %v138 = vpack.c.b16 %v111, %v110
  %v139 = vpack.c.b16 %v113, %v112
  %v140 = vpack.c.b16 %v115, %v114
  %v141 = vpack.c.b16 %v117, %v116
  %v142 = vpack.c.b16 %v119, %v118
  %v143 = vpack.c.b16 %v121, %v120
  %v144 = vpack.c.b16 %v123, %v122
  %v145 = vpack.c.b16 %v125, %v124
  %v146 = vpack.c.b16 %v127, %v126
  %v147 = vpack.c.b16 %v129, %v128
  %vm166 = vcmask 130048
  %167 = vst.msk [vmem:[#allocation2] sm:$0xff] %vm166, %v130
  %168 = vst.msk [vmem:[#allocation2 + $0x10] sm:$0xff] %vm166, %v131
  %169 = vst.msk [vmem:[#allocation2 + $0x20] sm:$0xff] %vm166, %v132
  %170 = vst.msk [vmem:[#allocation2 + $0x30] sm:$0xff] %vm166, %v133
  %171 = vst.msk [vmem:[#allocation2 + $0x40] sm:$0xff] %vm166, %v134
  %172 = vst.msk [vmem:[#allocation2 + $0x50] sm:$0xff] %vm166, %v135
  %173 = vst.msk [vmem:[#allocation2 + $0x60] sm:$0xff] %vm166, %v136
  %174 = vst.msk [vmem:[#allocation2 + $0x70] sm:$0xff] %vm166, %v137
  %175 = vst.msk [vmem:[#allocation2 + $0x80] sm:$0xff] %vm166, %v138
  %176 = vst.msk [vmem:[#allocation2 + $0x90] sm:$0xff] %vm166, %v139
  %177 = vst.msk [vmem:[#allocation2 + $0xa0] sm:$0xff] %vm166, %v140
  %178 = vst.msk [vmem:[#allocation2 + $0xb0] sm:$0xff] %vm166, %v141
  %179 = vst.msk [vmem:[#allocation2 + $0xc0] sm:$0xff] %vm166, %v142
  %180 = vst.msk [vmem:[#allocation2 + $0xd0] sm:$0xff] %vm166, %v143
  %181 = vst.msk [vmem:[#allocation2 + $0xe0] sm:$0xff] %vm166, %v144
  %182 = vst.msk [vmem:[#allocation2 + $0xf0] sm:$0xff] %vm166, %v145
  %183 = vst.msk [vmem:[#allocation2 + $0x100] sm:$0xff] %vm166, %v146
  %184 = vst.msk [vmem:[#allocation2 + $0x110] sm:$0xff] %vm166, %v147
  %v186 = vunpack.c.l.b16 %v53
  %v187 = vpack.c.b16 %v186, %v186
  %vm188 = vsmask.f32 7424
  %v190 = vshrl.u32 %v130, 16
  %v192 = vshll.u32 %v130, 16
  %v194 = vrot.slane %v192, 1
  %v195 = vor.u32 %v190, %v194
  %v197 = vshll.u32 %v131, 16
  %v199 = vrot.slane %v197, 1
  %v200 = vsel %vm188, %v195, %v199
  %v201 = vshrl.u32 %v131, 16
  %v203 = vor.u32 %v201, %v199
  %v205 = vshll.u32 %v132, 16
  %v207 = vrot.slane %v205, 1
  %v208 = vsel %vm188, %v203, %v207
  %v209 = vshrl.u32 %v132, 16
  %v211 = vor.u32 %v209, %v207
  %v213 = vshll.u32 %v133, 16
  %v215 = vrot.slane %v213, 1
  %v216 = vsel %vm188, %v211, %v215
  %v217 = vshrl.u32 %v133, 16
  %v219 = vor.u32 %v217, %v215
  %v221 = vshll.u32 %v134, 16
  %v223 = vrot.slane %v221, 1
  %v224 = vsel %vm188, %v219, %v223
  %v225 = vshrl.u32 %v134, 16
  %v227 = vor.u32 %v225, %v223
  %v229 = vshll.u32 %v135, 16
  %v231 = vrot.slane %v229, 1
  %v232 = vsel %vm188, %v227, %v231
  %v233 = vshrl.u32 %v135, 16
  %v235 = vor.u32 %v233, %v231
  %v237 = vshll.u32 %v136, 16
  %v239 = vrot.slane %v237, 1
  %v240 = vsel %vm188, %v235, %v239
  %v241 = vshrl.u32 %v136, 16
  %v243 = vor.u32 %v241, %v239
  %v245 = vshll.u32 %v137, 16
  %v247 = vrot.slane %v245, 1
  %v248 = vsel %vm188, %v243, %v247
  %v249 = vshrl.u32 %v137, 16
  %v251 = vor.u32 %v249, %v247
  %v253 = vshll.u32 %v138, 16
  %v255 = vrot.slane %v253, 1
  %v256 = vsel %vm188, %v251, %v255
  %v257 = vshrl.u32 %v138, 16
  %v259 = vor.u32 %v257, %v255
  %v261 = vshll.u32 %v139, 16
  %v263 = vrot.slane %v261, 1
  %v264 = vsel %vm188, %v259, %v263
  %v265 = vshrl.u32 %v139, 16
  %v267 = vor.u32 %v265, %v263
  %v269 = vshll.u32 %v140, 16
  %v271 = vrot.slane %v269, 1
  %v272 = vsel %vm188, %v267, %v271
  %v273 = vshrl.u32 %v140, 16
  %v275 = vor.u32 %v273, %v271
  %v277 = vshll.u32 %v141, 16
  %v279 = vrot.slane %v277, 1
  %v280 = vsel %vm188, %v275, %v279
  %v281 = vshrl.u32 %v141, 16
  %v283 = vor.u32 %v281, %v279
  %v285 = vshll.u32 %v142, 16
  %v287 = vrot.slane %v285, 1
  %v288 = vsel %vm188, %v283, %v287
  %v289 = vshrl.u32 %v142, 16
  %v291 = vor.u32 %v289, %v287
  %v293 = vshll.u32 %v143, 16
  %v295 = vrot.slane %v293, 1
  %v296 = vsel %vm188, %v291, %v295
  %v297 = vshrl.u32 %v143, 16
  %v299 = vor.u32 %v297, %v295
  %v301 = vshll.u32 %v144, 16
  %v303 = vrot.slane %v301, 1
  %v304 = vsel %vm188, %v299, %v303
  %v305 = vshrl.u32 %v144, 16
  %v307 = vor.u32 %v305, %v303
  %v309 = vshll.u32 %v145, 16
  %v311 = vrot.slane %v309, 1
  %v312 = vsel %vm188, %v307, %v311
  %v313 = vshrl.u32 %v145, 16
  %v315 = vor.u32 %v313, %v311
  %v317 = vshll.u32 %v146, 16
  %v319 = vrot.slane %v317, 1
  %v320 = vsel %vm188, %v315, %v319
  %v321 = vshrl.u32 %v146, 16
  %v323 = vor.u32 %v321, %v319
  %v325 = vshll.u32 %v147, 16
  %v327 = vrot.slane %v325, 1
  %v328 = vsel %vm188, %v323, %v327
  %v329 = vshrl.u32 %v147, 16
  %v331 = vor.u32 %v329, %v327
  %v333 = vshll.u32 %v187, 16
  %v335 = vrot.slane %v333, 1
  %v336 = vsel %vm188, %v331, %v335
  %337 = vrot.lane.b32.xlu0 %v200, 16
  %v338 = vpop.permute.xlu0 %337
  %339 = vrot.lane.b32.xlu0 %v208, 16
  %v340 = vpop.permute.xlu0 %339
  %341 = vrot.lane.b32.xlu0 %v216, 16
  %v342 = vpop.permute.xlu0 %341
  %343 = vrot.lane.b32.xlu0 %v224, 16
  %v344 = vpop.permute.xlu0 %343
  %345 = vrot.lane.b32.xlu0 %v232, 16
  %v346 = vpop.permute.xlu0 %345
  %347 = vrot.lane.b32.xlu0 %v240, 16
  %v348 = vpop.permute.xlu0 %347
  %349 = vrot.lane.b32.xlu0 %v248, 16
  %v350 = vpop.permute.xlu0 %349
  %351 = vrot.lane.b32.xlu0 %v256, 16
  %v352 = vpop.permute.xlu0 %351
  %353 = vrot.lane.b32.xlu0 %v264, 16
  %v354 = vpop.permute.xlu0 %353
  %355 = vrot.lane.b32.xlu0 %v272, 16
  %v356 = vpop.permute.xlu0 %355
  %357 = vrot.lane.b32.xlu0 %v280, 16
  %v358 = vpop.permute.xlu0 %357
  %359 = vrot.lane.b32.xlu0 %v288, 16
  %v360 = vpop.permute.xlu0 %359
  %361 = vrot.lane.b32.xlu0 %v296, 16
  %v362 = vpop.permute.xlu0 %361
  %363 = vrot.lane.b32.xlu0 %v304, 16
  %v364 = vpop.permute.xlu0 %363
  %365 = vrot.lane.b32.xlu0 %v312, 16
  %v366 = vpop.permute.xlu0 %365
  %367 = vrot.lane.b32.xlu0 %v320, 16
  %v368 = vpop.permute.xlu0 %367
  %369 = vrot.lane.b32.xlu0 %v328, 16
  %v370 = vpop.permute.xlu0 %369
  %371 = vrot.lane.b32.xlu0 %v336, 16
  %v372 = vpop.permute.xlu0 %371
  %vm391 = vcmask 261248
  %392 = vst.msk [vmem:[#allocation2] sm:$0xff] %vm391, %v338
  %393 = vst.msk [vmem:[#allocation2 + $0x10] sm:$0xff] %vm391, %v340
  %394 = vst.msk [vmem:[#allocation2 + $0x20] sm:$0xff] %vm391, %v342
  %395 = vst.msk [vmem:[#allocation2 + $0x30] sm:$0xff] %vm391, %v344
  %396 = vst.msk [vmem:[#allocation2 + $0x40] sm:$0xff] %vm391, %v346
  %397 = vst.msk [vmem:[#allocation2 + $0x50] sm:$0xff] %vm391, %v348
  %398 = vst.msk [vmem:[#allocation2 + $0x60] sm:$0xff] %vm391, %v350
  %399 = vst.msk [vmem:[#allocation2 + $0x70] sm:$0xff] %vm391, %v352
  %400 = vst.msk [vmem:[#allocation2 + $0x80] sm:$0xff] %vm391, %v354
  %401 = vst.msk [vmem:[#allocation2 + $0x90] sm:$0xff] %vm391, %v356
  %402 = vst.msk [vmem:[#allocation2 + $0xa0] sm:$0xff] %vm391, %v358
  %403 = vst.msk [vmem:[#allocation2 + $0xb0] sm:$0xff] %vm391, %v360
  %404 = vst.msk [vmem:[#allocation2 + $0xc0] sm:$0xff] %vm391, %v362
  %405 = vst.msk [vmem:[#allocation2 + $0xd0] sm:$0xff] %vm391, %v364
  %406 = vst.msk [vmem:[#allocation2 + $0xe0] sm:$0xff] %vm391, %v366
  %407 = vst.msk [vmem:[#allocation2 + $0xf0] sm:$0xff] %vm391, %v368
  %408 = vst.msk [vmem:[#allocation2 + $0x100] sm:$0xff] %vm391, %v370
  %409 = vst.msk [vmem:[#allocation2 + $0x110] sm:$0xff] %vm391, %v372
  %vm410 = vcmask 1046528
  %v411 = vrot.slane %v130, 1
  %v412 = vrot.slane %v131, 1
  %v413 = vsel %vm410, %v411, %v412
  %v414 = vrot.slane %v132, 1
  %v415 = vsel %vm410, %v412, %v414
  %v416 = vrot.slane %v133, 1
  %v417 = vsel %vm410, %v414, %v416
  %v418 = vrot.slane %v134, 1
  %v419 = vsel %vm410, %v416, %v418
  %v420 = vrot.slane %v135, 1
  %v421 = vsel %vm410, %v418, %v420
  %v422 = vrot.slane %v136, 1
  %v423 = vsel %vm410, %v420, %v422
  %v424 = vrot.slane %v137, 1
  %v425 = vsel %vm410, %v422, %v424
  %v426 = vrot.slane %v138, 1
  %v427 = vsel %vm410, %v424, %v426
  %v428 = vrot.slane %v139, 1
  %v429 = vsel %vm410, %v426, %v428
  %v430 = vrot.slane %v140, 1
  %v431 = vsel %vm410, %v428, %v430
  %v432 = vrot.slane %v141, 1
  %v433 = vsel %vm410, %v430, %v432
  %v434 = vrot.slane %v142, 1
  %v435 = vsel %vm410, %v432, %v434
  %v436 = vrot.slane %v143, 1
  %v437 = vsel %vm410, %v434, %v436
  %v438 = vrot.slane %v144, 1
  %v439 = vsel %vm410, %v436, %v438
  %v440 = vrot.slane %v145, 1
  %v441 = vsel %vm410, %v438, %v440
  %v442 = vrot.slane %v146, 1
  %v443 = vsel %vm410, %v440, %v442
  %v444 = vrot.slane %v147, 1
  %v445 = vsel %vm410, %v442, %v444
  %v446 = vrot.slane %v187, 1
  %v447 = vsel %vm410, %v444, %v446
  %448 = vrot.lane.b32.xlu0 %v413, 32
  %v449 = vpop.permute.xlu0 %448
  %450 = vrot.lane.b32.xlu0 %v415, 32
  %v451 = vpop.permute.xlu0 %450
  %452 = vrot.lane.b32.xlu0 %v417, 32
  %v453 = vpop.permute.xlu0 %452
  %454 = vrot.lane.b32.xlu0 %v419, 32
  %v455 = vpop.permute.xlu0 %454
  %456 = vrot.lane.b32.xlu0 %v421, 32
  %v457 = vpop.permute.xlu0 %456
  %458 = vrot.lane.b32.xlu0 %v423, 32
  %v459 = vpop.permute.xlu0 %458
  %460 = vrot.lane.b32.xlu0 %v425, 32
  %v461 = vpop.permute.xlu0 %460
  %462 = vrot.lane.b32.xlu0 %v427, 32
  %v463 = vpop.permute.xlu0 %462
  %464 = vrot.lane.b32.xlu0 %v429, 32
  %v465 = vpop.permute.xlu0 %464
  %466 = vrot.lane.b32.xlu0 %v431, 32
  %v467 = vpop.permute.xlu0 %466
  %468 = vrot.lane.b32.xlu0 %v433, 32
  %v469 = vpop.permute.xlu0 %468
  %470 = vrot.lane.b32.xlu0 %v435, 32
  %v471 = vpop.permute.xlu0 %470
  %472 = vrot.lane.b32.xlu0 %v437, 32
  %v473 = vpop.permute.xlu0 %472
  %474 = vrot.lane.b32.xlu0 %v439, 32
  %v475 = vpop.permute.xlu0 %474
  %476 = vrot.lane.b32.xlu0 %v441, 32
  %v477 = vpop.permute.xlu0 %476
  %478 = vrot.lane.b32.xlu0 %v443, 32
  %v479 = vpop.permute.xlu0 %478
  %480 = vrot.lane.b32.xlu0 %v445, 32
  %v481 = vpop.permute.xlu0 %480
  %482 = vrot.lane.b32.xlu0 %v447, 32
  %v483 = vpop.permute.xlu0 %482
  %vm502 = vcmask 392448
  %503 = vst.msk [vmem:[#allocation2] sm:$0xff] %vm502, %v449
  %504 = vst.msk [vmem:[#allocation2 + $0x10] sm:$0xff] %vm502, %v451
  %505 = vst.msk [vmem:[#allocation2 + $0x20] sm:$0xff] %vm502, %v453
  %506 = vst.msk [vmem:[#allocation2 + $0x30] sm:$0xff] %vm502, %v455
  %507 = vst.msk [vmem:[#allocation2 + $0x40] sm:$0xff] %vm502, %v457
  %508 = vst.msk [vmem:[#allocation2 + $0x50] sm:$0xff] %vm502, %v459
  %509 = vst.msk [vmem:[#allocation2 + $0x60] sm:$0xff] %vm502, %v461
  %510 = vst.msk [vmem:[#allocation2 + $0x70] sm:$0xff] %vm502, %v463
  %511 = vst.msk [vmem:[#allocation2 + $0x80] sm:$0xff] %vm502, %v465
  %512 = vst.msk [vmem:[#allocation2 + $0x90] sm:$0xff] %vm502, %v467
  %513 = vst.msk [vmem:[#allocation2 + $0xa0] sm:$0xff] %vm502, %v469
  %514 = vst.msk [vmem:[#allocation2 + $0xb0] sm:$0xff] %vm502, %v471
  %515 = vst.msk [vmem:[#allocation2 + $0xc0] sm:$0xff] %vm502, %v473
  %516 = vst.msk [vmem:[#allocation2 + $0xd0] sm:$0xff] %vm502, %v475
  %517 = vst.msk [vmem:[#allocation2 + $0xe0] sm:$0xff] %vm502, %v477
  %518 = vst.msk [vmem:[#allocation2 + $0xf0] sm:$0xff] %vm502, %v479
  %519 = vst.msk [vmem:[#allocation2 + $0x100] sm:$0xff] %vm502, %v481
  %520 = vst.msk [vmem:[#allocation2 + $0x110] sm:$0xff] %vm502, %v483
  %v523 = vunpack.c.l.b16 %v54
  %v524 = vunpack.c.l.b16 %v55
  %v525 = vpack.c.b16 %v523, %v186
  %v526 = vpack.c.b16 %v524, %v524
  %v527 = vrot.slane %v525, 1
  %v528 = vsel %vm410, %v444, %v527
  %v529 = vrot.slane %v526, 1
  %v530 = vsel %vm410, %v527, %v529
  %531 = vrot.lane.b32.xlu0 %v415, 48
  %v532 = vpop.permute.xlu0 %531
  %533 = vrot.lane.b32.xlu0 %v417, 48
  %v534 = vpop.permute.xlu0 %533
  %535 = vrot.lane.b32.xlu0 %v419, 48
  %v536 = vpop.permute.xlu0 %535
  %537 = vrot.lane.b32.xlu0 %v421, 48
  %v538 = vpop.permute.xlu0 %537
  %539 = vrot.lane.b32.xlu0 %v423, 48
  %v540 = vpop.permute.xlu0 %539
  %541 = vrot.lane.b32.xlu0 %v425, 48
  %v542 = vpop.permute.xlu0 %541
  %543 = vrot.lane.b32.xlu0 %v427, 48
  %v544 = vpop.permute.xlu0 %543
  %545 = vrot.lane.b32.xlu0 %v429, 48
  %v546 = vpop.permute.xlu0 %545
  %547 = vrot.lane.b32.xlu0 %v431, 48
  %v548 = vpop.permute.xlu0 %547
  %549 = vrot.lane.b32.xlu0 %v433, 48
  %v550 = vpop.permute.xlu0 %549
  %551 = vrot.lane.b32.xlu0 %v435, 48
  %v552 = vpop.permute.xlu0 %551
  %553 = vrot.lane.b32.xlu0 %v437, 48
  %v554 = vpop.permute.xlu0 %553
  %555 = vrot.lane.b32.xlu0 %v439, 48
  %v556 = vpop.permute.xlu0 %555
  %557 = vrot.lane.b32.xlu0 %v441, 48
  %v558 = vpop.permute.xlu0 %557
  %559 = vrot.lane.b32.xlu0 %v443, 48
  %v560 = vpop.permute.xlu0 %559
  %561 = vrot.lane.b32.xlu0 %v445, 48
  %v562 = vpop.permute.xlu0 %561
  %563 = vrot.lane.b32.xlu0 %v528, 48
  %v564 = vpop.permute.xlu0 %563
  %565 = vrot.lane.b32.xlu0 %v530, 48
  %v566 = vpop.permute.xlu0 %565
  %vm585 = vcmask 523648
  %586 = vst.msk [vmem:[#allocation2] sm:$0xff] %vm585, %v532
  %587 = vst.msk [vmem:[#allocation2 + $0x10] sm:$0xff] %vm585, %v534
  %588 = vst.msk [vmem:[#allocation2 + $0x20] sm:$0xff] %vm585, %v536
  %589 = vst.msk [vmem:[#allocation2 + $0x30] sm:$0xff] %vm585, %v538
  %590 = vst.msk [vmem:[#allocation2 + $0x40] sm:$0xff] %vm585, %v540
  %591 = vst.msk [vmem:[#allocation2 + $0x50] sm:$0xff] %vm585, %v542
  %592 = vst.msk [vmem:[#allocation2 + $0x60] sm:$0xff] %vm585, %v544
  %593 = vst.msk [vmem:[#allocation2 + $0x70] sm:$0xff] %vm585, %v546
  %594 = vst.msk [vmem:[#allocation2 + $0x80] sm:$0xff] %vm585, %v548
  %595 = vst.msk [vmem:[#allocation2 + $0x90] sm:$0xff] %vm585, %v550
  %596 = vst.msk [vmem:[#allocation2 + $0xa0] sm:$0xff] %vm585, %v552
  %597 = vst.msk [vmem:[#allocation2 + $0xb0] sm:$0xff] %vm585, %v554
  %598 = vst.msk [vmem:[#allocation2 + $0xc0] sm:$0xff] %vm585, %v556
  %599 = vst.msk [vmem:[#allocation2 + $0xd0] sm:$0xff] %vm585, %v558
  %600 = vst.msk [vmem:[#allocation2 + $0xe0] sm:$0xff] %vm585, %v560
  %601 = vst.msk [vmem:[#allocation2 + $0xf0] sm:$0xff] %vm585, %v562
  %602 = vst.msk [vmem:[#allocation2 + $0x100] sm:$0xff] %vm585, %v564
  %603 = vst.msk [vmem:[#allocation2 + $0x110] sm:$0xff] %vm585, %v566
  %vm604 = vsmask.f32 6400
  %v605 = vrot.slane %v201, 1
  %v606 = vrot.slane %v197, 2
  %v607 = vor.u32 %v605, %v606
  %v608 = vrot.slane %v209, 1
  %v609 = vrot.slane %v205, 2
  %v610 = vor.u32 %v608, %v609
  %v611 = vsel %vm604, %v607, %v610
  %v612 = vrot.slane %v217, 1
  %v613 = vrot.slane %v213, 2
  %v614 = vor.u32 %v612, %v613
  %v615 = vsel %vm604, %v610, %v614
  %v616 = vrot.slane %v225, 1
  %v617 = vrot.slane %v221, 2
  %v618 = vor.u32 %v616, %v617
  %v619 = vsel %vm604, %v614, %v618
  %v620 = vrot.slane %v233, 1
  %v621 = vrot.slane %v229, 2
  %v622 = vor.u32 %v620, %v621
  %v623 = vsel %vm604, %v618, %v622
  %v624 = vrot.slane %v241, 1
  %v625 = vrot.slane %v237, 2
  %v626 = vor.u32 %v624, %v625
  %v627 = vsel %vm604, %v622, %v626
  %v628 = vrot.slane %v249, 1
  %v629 = vrot.slane %v245, 2
  %v630 = vor.u32 %v628, %v629
  %v631 = vsel %vm604, %v626, %v630
  %v632 = vrot.slane %v257, 1
  %v633 = vrot.slane %v253, 2
  %v634 = vor.u32 %v632, %v633
  %v635 = vsel %vm604, %v630, %v634
  %v636 = vrot.slane %v265, 1
  %v637 = vrot.slane %v261, 2
  %v638 = vor.u32 %v636, %v637
  %v639 = vsel %vm604, %v634, %v638
  %v640 = vrot.slane %v273, 1
  %v641 = vrot.slane %v269, 2
  %v642 = vor.u32 %v640, %v641
  %v643 = vsel %vm604, %v638, %v642
  %v644 = vrot.slane %v281, 1
  %v645 = vrot.slane %v277, 2
  %v646 = vor.u32 %v644, %v645
  %v647 = vsel %vm604, %v642, %v646
  %v648 = vrot.slane %v289, 1
  %v649 = vrot.slane %v285, 2
  %v650 = vor.u32 %v648, %v649
  %v651 = vsel %vm604, %v646, %v650
  %v652 = vrot.slane %v297, 1
  %v653 = vrot.slane %v293, 2
  %v654 = vor.u32 %v652, %v653
  %v655 = vsel %vm604, %v650, %v654
  %v656 = vrot.slane %v305, 1
  %v657 = vrot.slane %v301, 2
  %v658 = vor.u32 %v656, %v657
  %v659 = vsel %vm604, %v654, %v658
  %v660 = vrot.slane %v313, 1
  %v661 = vrot.slane %v309, 2
  %v662 = vor.u32 %v660, %v661
  %v663 = vsel %vm604, %v658, %v662
  %v664 = vrot.slane %v321, 1
  %v665 = vrot.slane %v317, 2
  %v666 = vor.u32 %v664, %v665
  %v667 = vsel %vm604, %v662, %v666
  %v668 = vrot.slane %v329, 1
  %v669 = vrot.slane %v325, 2
  %v670 = vor.u32 %v668, %v669
  %v671 = vsel %vm604, %v666, %v670
  %v673 = vshrl.u32 %v525, 16
  %v675 = vrot.slane %v673, 1
  %v676 = vshll.u32 %v525, 16
  %v678 = vrot.slane %v676, 2
  %v679 = vor.u32 %v675, %v678
  %v680 = vsel %vm604, %v670, %v679
  %v682 = vshrl.u32 %v526, 16
  %v684 = vrot.slane %v682, 1
  %v685 = vshll.u32 %v526, 16
  %v687 = vrot.slane %v685, 2
  %v688 = vor.u32 %v684, %v687
  %v689 = vsel %vm604, %v679, %v688
  %690 = vrot.lane.b32.xlu0 %v611, 64
  %v691 = vpop.permute.xlu0 %690
  %692 = vrot.lane.b32.xlu0 %v615, 64
  %v693 = vpop.permute.xlu0 %692
  %694 = vrot.lane.b32.xlu0 %v619, 64
  %v695 = vpop.permute.xlu0 %694
  %696 = vrot.lane.b32.xlu0 %v623, 64
  %v697 = vpop.permute.xlu0 %696
  %698 = vrot.lane.b32.xlu0 %v627, 64
  %v699 = vpop.permute.xlu0 %698
  %700 = vrot.lane.b32.xlu0 %v631, 64
  %v701 = vpop.permute.xlu0 %700
  %702 = vrot.lane.b32.xlu0 %v635, 64
  %v703 = vpop.permute.xlu0 %702
  %704 = vrot.lane.b32.xlu0 %v639, 64
  %v705 = vpop.permute.xlu0 %704
  %706 = vrot.lane.b32.xlu0 %v643, 64
  %v707 = vpop.permute.xlu0 %706
  %708 = vrot.lane.b32.xlu0 %v647, 64
  %v709 = vpop.permute.xlu0 %708
  %710 = vrot.lane.b32.xlu0 %v651, 64
  %v711 = vpop.permute.xlu0 %710
  %712 = vrot.lane.b32.xlu0 %v655, 64
  %v713 = vpop.permute.xlu0 %712
  %714 = vrot.lane.b32.xlu0 %v659, 64
  %v715 = vpop.permute.xlu0 %714
  %716 = vrot.lane.b32.xlu0 %v663, 64
  %v717 = vpop.permute.xlu0 %716
  %718 = vrot.lane.b32.xlu0 %v667, 64
  %v719 = vpop.permute.xlu0 %718
  %720 = vrot.lane.b32.xlu0 %v671, 64
  %v721 = vpop.permute.xlu0 %720
  %722 = vrot.lane.b32.xlu0 %v680, 64
  %v723 = vpop.permute.xlu0 %722
  %724 = vrot.lane.b32.xlu0 %v689, 64
  %v725 = vpop.permute.xlu0 %724
  %vm744 = vcmask 654848
  %745 = vst.msk [vmem:[#allocation2] sm:$0xff] %vm744, %v691
  %746 = vst.msk [vmem:[#allocation2 + $0x10] sm:$0xff] %vm744, %v693
  %747 = vst.msk [vmem:[#allocation2 + $0x20] sm:$0xff] %vm744, %v695
  %748 = vst.msk [vmem:[#allocation2 + $0x30] sm:$0xff] %vm744, %v697
  %749 = vst.msk [vmem:[#allocation2 + $0x40] sm:$0xff] %vm744, %v699
  %750 = vst.msk [vmem:[#allocation2 + $0x50] sm:$0xff] %vm744, %v701
  %751 = vst.msk [vmem:[#allocation2 + $0x60] sm:$0xff] %vm744, %v703
  %752 = vst.msk [vmem:[#allocation2 + $0x70] sm:$0xff] %vm744, %v705
  %753 = vst.msk [vmem:[#allocation2 + $0x80] sm:$0xff] %vm744, %v707
  %754 = vst.msk [vmem:[#allocation2 + $0x90] sm:$0xff] %vm744, %v709
  %755 = vst.msk [vmem:[#allocation2 + $0xa0] sm:$0xff] %vm744, %v711
  %756 = vst.msk [vmem:[#allocation2 + $0xb0] sm:$0xff] %vm744, %v713
  %757 = vst.msk [vmem:[#allocation2 + $0xc0] sm:$0xff] %vm744, %v715
  %758 = vst.msk [vmem:[#allocation2 + $0xd0] sm:$0xff] %vm744, %v717
  %759 = vst.msk [vmem:[#allocation2 + $0xe0] sm:$0xff] %vm744, %v719
  %760 = vst.msk [vmem:[#allocation2 + $0xf0] sm:$0xff] %vm744, %v721
  %761 = vst.msk [vmem:[#allocation2 + $0x100] sm:$0xff] %vm744, %v723
  %762 = vst.msk [vmem:[#allocation2 + $0x110] sm:$0xff] %vm744, %v725
  %vm763 = vcmask 1045504
  %v764 = vrot.slane %v131, 2
  %v765 = vrot.slane %v132, 2
  %v766 = vsel %vm763, %v764, %v765
  %v767 = vrot.slane %v133, 2
  %v768 = vsel %vm763, %v765, %v767
  %v769 = vrot.slane %v134, 2
  %v770 = vsel %vm763, %v767, %v769
  %v771 = vrot.slane %v135, 2
  %v772 = vsel %vm763, %v769, %v771
  %v773 = vrot.slane %v136, 2
  %v774 = vsel %vm763, %v771, %v773
  %v775 = vrot.slane %v137, 2
  %v776 = vsel %vm763, %v773, %v775
  %v777 = vrot.slane %v138, 2
  %v778 = vsel %vm763, %v775, %v777
  %v779 = vrot.slane %v139, 2
  %v780 = vsel %vm763, %v777, %v779
  %v781 = vrot.slane %v140, 2
  %v782 = vsel %vm763, %v779, %v781
  %v783 = vrot.slane %v141, 2
  %v784 = vsel %vm763, %v781, %v783
  %v785 = vrot.slane %v142, 2
  %v786 = vsel %vm763, %v783, %v785
  %v787 = vrot.slane %v143, 2
  %v788 = vsel %vm763, %v785, %v787
  %v789 = vrot.slane %v144, 2
  %v790 = vsel %vm763, %v787, %v789
  %v791 = vrot.slane %v145, 2
  %v792 = vsel %vm763, %v789, %v791
  %v793 = vrot.slane %v146, 2
  %v794 = vsel %vm763, %v791, %v793
  %v795 = vrot.slane %v147, 2
  %v796 = vsel %vm763, %v793, %v795
  %v797 = vrot.slane %v525, 2
  %v798 = vsel %vm763, %v795, %v797
  %v799 = vrot.slane %v526, 2
  %v800 = vsel %vm763, %v797, %v799
  %801 = vrot.lane.b32.xlu0 %v766, 80
  %v802 = vpop.permute.xlu0 %801
  %803 = vrot.lane.b32.xlu0 %v768, 80
  %v804 = vpop.permute.xlu0 %803
  %805 = vrot.lane.b32.xlu0 %v770, 80
  %v806 = vpop.permute.xlu0 %805
  %807 = vrot.lane.b32.xlu0 %v772, 80
  %v808 = vpop.permute.xlu0 %807
  %809 = vrot.lane.b32.xlu0 %v774, 80
  %v810 = vpop.permute.xlu0 %809
  %811 = vrot.lane.b32.xlu0 %v776, 80
  %v812 = vpop.permute.xlu0 %811
  %813 = vrot.lane.b32.xlu0 %v778, 80
  %v814 = vpop.permute.xlu0 %813
  %815 = vrot.lane.b32.xlu0 %v780, 80
  %v816 = vpop.permute.xlu0 %815
  %817 = vrot.lane.b32.xlu0 %v782, 80
  %v818 = vpop.permute.xlu0 %817
  %819 = vrot.lane.b32.xlu0 %v784, 80
  %v820 = vpop.permute.xlu0 %819
  %821 = vrot.lane.b32.xlu0 %v786, 80
  %v822 = vpop.permute.xlu0 %821
  %823 = vrot.lane.b32.xlu0 %v788, 80
  %v824 = vpop.permute.xlu0 %823
  %825 = vrot.lane.b32.xlu0 %v790, 80
  %v826 = vpop.permute.xlu0 %825
  %827 = vrot.lane.b32.xlu0 %v792, 80
  %v828 = vpop.permute.xlu0 %827
  %829 = vrot.lane.b32.xlu0 %v794, 80
  %v830 = vpop.permute.xlu0 %829
  %831 = vrot.lane.b32.xlu0 %v796, 80
  %v832 = vpop.permute.xlu0 %831
  %833 = vrot.lane.b32.xlu0 %v798, 80
  %v834 = vpop.permute.xlu0 %833
  %835 = vrot.lane.b32.xlu0 %v800, 80
  %v836 = vpop.permute.xlu0 %835
  %vm855 = vcmask 786048
  %856 = vst.msk [vmem:[#allocation2] sm:$0xff] %vm855, %v802
  %857 = vst.msk [vmem:[#allocation2 + $0x10] sm:$0xff] %vm855, %v804
  %858 = vst.msk [vmem:[#allocation2 + $0x20] sm:$0xff] %vm855, %v806
  %859 = vst.msk [vmem:[#allocation2 + $0x30] sm:$0xff] %vm855, %v808
  %860 = vst.msk [vmem:[#allocation2 + $0x40] sm:$0xff] %vm855, %v810
  %861 = vst.msk [vmem:[#allocation2 + $0x50] sm:$0xff] %vm855, %v812
  %862 = vst.msk [vmem:[#allocation2 + $0x60] sm:$0xff] %vm855, %v814
  %863 = vst.msk [vmem:[#allocation2 + $0x70] sm:$0xff] %vm855, %v816
  %864 = vst.msk [vmem:[#allocation2 + $0x80] sm:$0xff] %vm855, %v818
  %865 = vst.msk [vmem:[#allocation2 + $0x90] sm:$0xff] %vm855, %v820
  %866 = vst.msk [vmem:[#allocation2 + $0xa0] sm:$0xff] %vm855, %v822
  %867 = vst.msk [vmem:[#allocation2 + $0xb0] sm:$0xff] %vm855, %v824
  %868 = vst.msk [vmem:[#allocation2 + $0xc0] sm:$0xff] %vm855, %v826
  %869 = vst.msk [vmem:[#allocation2 + $0xd0] sm:$0xff] %vm855, %v828
  %870 = vst.msk [vmem:[#allocation2 + $0xe0] sm:$0xff] %vm855, %v830
  %871 = vst.msk [vmem:[#allocation2 + $0xf0] sm:$0xff] %vm855, %v832
  %872 = vst.msk [vmem:[#allocation2 + $0x100] sm:$0xff] %vm855, %v834
  %873 = vst.msk [vmem:[#allocation2 + $0x110] sm:$0xff] %vm855, %v836
  %v876 = vunpack.c.l.b16 %v56
  %v877 = vunpack.c.l.b16 %v57
  %v878 = vpack.c.b16 %v876, %v524
  %v879 = vpack.c.b16 %v877, %v877
  %v880 = vrot.slane %v878, 2
  %v881 = vsel %vm763, %v797, %v880
  %v882 = vrot.slane %v879, 2
  %v883 = vsel %vm763, %v880, %v882
  %884 = vrot.lane.b32.xlu0 %v768, 96
  %v885 = vpop.permute.xlu0 %884
  %886 = vrot.lane.b32.xlu0 %v770, 96
  %v887 = vpop.permute.xlu0 %886
  %888 = vrot.lane.b32.xlu0 %v772, 96
  %v889 = vpop.permute.xlu0 %888
  %890 = vrot.lane.b32.xlu0 %v774, 96
  %v891 = vpop.permute.xlu0 %890
  %892 = vrot.lane.b32.xlu0 %v776, 96
  %v893 = vpop.permute.xlu0 %892
  %894 = vrot.lane.b32.xlu0 %v778, 96
  %v895 = vpop.permute.xlu0 %894
  %896 = vrot.lane.b32.xlu0 %v780, 96
  %v897 = vpop.permute.xlu0 %896
  %898 = vrot.lane.b32.xlu0 %v782, 96
  %v899 = vpop.permute.xlu0 %898
  %900 = vrot.lane.b32.xlu0 %v784, 96
  %v901 = vpop.permute.xlu0 %900
  %902 = vrot.lane.b32.xlu0 %v786, 96
  %v903 = vpop.permute.xlu0 %902
  %904 = vrot.lane.b32.xlu0 %v788, 96
  %v905 = vpop.permute.xlu0 %904
  %906 = vrot.lane.b32.xlu0 %v790, 96
  %v907 = vpop.permute.xlu0 %906
  %908 = vrot.lane.b32.xlu0 %v792, 96
  %v909 = vpop.permute.xlu0 %908
  %910 = vrot.lane.b32.xlu0 %v794, 96
  %v911 = vpop.permute.xlu0 %910
  %912 = vrot.lane.b32.xlu0 %v796, 96
  %v913 = vpop.permute.xlu0 %912
  %914 = vrot.lane.b32.xlu0 %v798, 96
  %v915 = vpop.permute.xlu0 %914
  %916 = vrot.lane.b32.xlu0 %v881, 96
  %v917 = vpop.permute.xlu0 %916
  %918 = vrot.lane.b32.xlu0 %v883, 96
  %v919 = vpop.permute.xlu0 %918
  %vm938 = vcmask 917248
  %939 = vst.msk [vmem:[#allocation2] sm:$0xff] %vm938, %v885
  %940 = vst.msk [vmem:[#allocation2 + $0x10] sm:$0xff] %vm938, %v887
  %941 = vst.msk [vmem:[#allocation2 + $0x20] sm:$0xff] %vm938, %v889
  %942 = vst.msk [vmem:[#allocation2 + $0x30] sm:$0xff] %vm938, %v891
  %943 = vst.msk [vmem:[#allocation2 + $0x40] sm:$0xff] %vm938, %v893
  %944 = vst.msk [vmem:[#allocation2 + $0x50] sm:$0xff] %vm938, %v895
  %945 = vst.msk [vmem:[#allocation2 + $0x60] sm:$0xff] %vm938, %v897
  %946 = vst.msk [vmem:[#allocation2 + $0x70] sm:$0xff] %vm938, %v899
  %947 = vst.msk [vmem:[#allocation2 + $0x80] sm:$0xff] %vm938, %v901
  %948 = vst.msk [vmem:[#allocation2 + $0x90] sm:$0xff] %vm938, %v903
  %949 = vst.msk [vmem:[#allocation2 + $0xa0] sm:$0xff] %vm938, %v905
  %950 = vst.msk [vmem:[#allocation2 + $0xb0] sm:$0xff] %vm938, %v907
  %951 = vst.msk [vmem:[#allocation2 + $0xc0] sm:$0xff] %vm938, %v909
  %952 = vst.msk [vmem:[#allocation2 + $0xd0] sm:$0xff] %vm938, %v911
  %953 = vst.msk [vmem:[#allocation2 + $0xe0] sm:$0xff] %vm938, %v913
  %954 = vst.msk [vmem:[#allocation2 + $0xf0] sm:$0xff] %vm938, %v915
  %955 = vst.msk [vmem:[#allocation2 + $0x100] sm:$0xff] %vm938, %v917
  %956 = vst.msk [vmem:[#allocation2 + $0x110] sm:$0xff] %vm938, %v919
  %vm957 = vsmask.f32 5376
  %v958 = vrot.slane %v209, 2
  %v959 = vrot.slane %v205, 3
  %v960 = vor.u32 %v958, %v959
  %v961 = vrot.slane %v217, 2
  %v962 = vrot.slane %v213, 3
  %v963 = vor.u32 %v961, %v962
  %v964 = vsel %vm957, %v960, %v963
  %v965 = vrot.slane %v225, 2
  %v966 = vrot.slane %v221, 3
  %v967 = vor.u32 %v965, %v966
  %v968 = vsel %vm957, %v963, %v967
  %v969 = vrot.slane %v233, 2
  %v970 = vrot.slane %v229, 3
  %v971 = vor.u32 %v969, %v970
  %v972 = vsel %vm957, %v967, %v971
  %v973 = vrot.slane %v241, 2
  %v974 = vrot.slane %v237, 3
  %v975 = vor.u32 %v973, %v974
  %v976 = vsel %vm957, %v971, %v975
  %v977 = vrot.slane %v249, 2
  %v978 = vrot.slane %v245, 3
  %v979 = vor.u32 %v977, %v978
  %v980 = vsel %vm957, %v975, %v979
  %v981 = vrot.slane %v257, 2
  %v982 = vrot.slane %v253, 3
  %v983 = vor.u32 %v981, %v982
  %v984 = vsel %vm957, %v979, %v983
  %v985 = vrot.slane %v265, 2
  %v986 = vrot.slane %v261, 3
  %v987 = vor.u32 %v985, %v986
  %v988 = vsel %vm957, %v983, %v987
  %v989 = vrot.slane %v273, 2
  %v990 = vrot.slane %v269, 3
  %v991 = vor.u32 %v989, %v990
  %v992 = vsel %vm957, %v987, %v991
  %v993 = vrot.slane %v281, 2
  %v994 = vrot.slane %v277, 3
  %v995 = vor.u32 %v993, %v994
  %v996 = vsel %vm957, %v991, %v995
  %v997 = vrot.slane %v289, 2
  %v998 = vrot.slane %v285, 3
  %v999 = vor.u32 %v997, %v998
  %v1000 = vsel %vm957, %v995, %v999
  %v1001 = vrot.slane %v297, 2
  %v1002 = vrot.slane %v293, 3
  %v1003 = vor.u32 %v1001, %v1002
  %v1004 = vsel %vm957, %v999, %v1003
  %v1005 = vrot.slane %v305, 2
  %v1006 = vrot.slane %v301, 3
  %v1007 = vor.u32 %v1005, %v1006
  %v1008 = vsel %vm957, %v1003, %v1007
  %v1009 = vrot.slane %v313, 2
  %v1010 = vrot.slane %v309, 3
  %v1011 = vor.u32 %v1009, %v1010
  %v1012 = vsel %vm957, %v1007, %v1011
  %v1013 = vrot.slane %v321, 2
  %v1014 = vrot.slane %v317, 3
  %v1015 = vor.u32 %v1013, %v1014
  %v1016 = vsel %vm957, %v1011, %v1015
  %v1017 = vrot.slane %v329, 2
  %v1018 = vrot.slane %v325, 3
  %v1019 = vor.u32 %v1017, %v1018
  %v1020 = vsel %vm957, %v1015, %v1019
  %v1021 = vrot.slane %v673, 2
  %v1022 = vrot.slane %v676, 3
  %v1023 = vor.u32 %v1021, %v1022
  %v1024 = vsel %vm957, %v1019, %v1023
  %v1026 = vshrl.u32 %v878, 16
  %v1028 = vrot.slane %v1026, 2
  %v1029 = vshll.u32 %v878, 16
  %v1031 = vrot.slane %v1029, 3
  %v1032 = vor.u32 %v1028, %v1031
  %v1033 = vsel %vm957, %v1023, %v1032
  %v1035 = vshrl.u32 %v879, 16
  %v1037 = vrot.slane %v1035, 2
  %v1038 = vshll.u32 %v879, 16
  %v1040 = vrot.slane %v1038, 3
  %v1041 = vor.u32 %v1037, %v1040
  %v1042 = vsel %vm957, %v1032, %v1041
  %1043 = vrot.lane.b32.xlu0 %v964, 112
  %v1044 = vpop.permute.xlu0 %1043
  %1045 = vrot.lane.b32.xlu0 %v968, 112
  %v1046 = vpop.permute.xlu0 %1045
  %1047 = vrot.lane.b32.xlu0 %v972, 112
  %v1048 = vpop.permute.xlu0 %1047
  %1049 = vrot.lane.b32.xlu0 %v976, 112
  %v1050 = vpop.permute.xlu0 %1049
  %1051 = vrot.lane.b32.xlu0 %v980, 112
  %v1052 = vpop.permute.xlu0 %1051
  %1053 = vrot.lane.b32.xlu0 %v984, 112
  %v1054 = vpop.permute.xlu0 %1053
  %1055 = vrot.lane.b32.xlu0 %v988, 112
  %v1056 = vpop.permute.xlu0 %1055
  %1057 = vrot.lane.b32.xlu0 %v992, 112
  %v1058 = vpop.permute.xlu0 %1057
  %1059 = vrot.lane.b32.xlu0 %v996, 112
  %v1060 = vpop.permute.xlu0 %1059
  %1061 = vrot.lane.b32.xlu0 %v1000, 112
  %v1062 = vpop.permute.xlu0 %1061
  %1063 = vrot.lane.b32.xlu0 %v1004, 112
  %v1064 = vpop.permute.xlu0 %1063
  %1065 = vrot.lane.b32.xlu0 %v1008, 112
  %v1066 = vpop.permute.xlu0 %1065
  %1067 = vrot.lane.b32.xlu0 %v1012, 112
  %v1068 = vpop.permute.xlu0 %1067
  %1069 = vrot.lane.b32.xlu0 %v1016, 112
  %v1070 = vpop.permute.xlu0 %1069
  %1071 = vrot.lane.b32.xlu0 %v1020, 112
  %v1072 = vpop.permute.xlu0 %1071
  %1073 = vrot.lane.b32.xlu0 %v1024, 112
  %v1074 = vpop.permute.xlu0 %1073
  %1075 = vrot.lane.b32.xlu0 %v1033, 112
  %v1076 = vpop.permute.xlu0 %1075
  %1077 = vrot.lane.b32.xlu0 %v1042, 112
  %v1078 = vpop.permute.xlu0 %1077
  %vm1097 = vcmask 1048448
  %1098 = vst.msk [vmem:[#allocation2] sm:$0xff] %vm1097, %v1044
  %1099 = vst.msk [vmem:[#allocation2 + $0x10] sm:$0xff] %vm1097, %v1046
  %1100 = vst.msk [vmem:[#allocation2 + $0x20] sm:$0xff] %vm1097, %v1048
  %1101 = vst.msk [vmem:[#allocation2 + $0x30] sm:$0xff] %vm1097, %v1050
  %1102 = vst.msk [vmem:[#allocation2 + $0x40] sm:$0xff] %vm1097, %v1052
  %1103 = vst.msk [vmem:[#allocation2 + $0x50] sm:$0xff] %vm1097, %v1054
  %1104 = vst.msk [vmem:[#allocation2 + $0x60] sm:$0xff] %vm1097, %v1056
  %1105 = vst.msk [vmem:[#allocation2 + $0x70] sm:$0xff] %vm1097, %v1058
  %1106 = vst.msk [vmem:[#allocation2 + $0x80] sm:$0xff] %vm1097, %v1060
  %1107 = vst.msk [vmem:[#allocation2 + $0x90] sm:$0xff] %vm1097, %v1062
  %1108 = vst.msk [vmem:[#allocation2 + $0xa0] sm:$0xff] %vm1097, %v1064
  %1109 = vst.msk [vmem:[#allocation2 + $0xb0] sm:$0xff] %vm1097, %v1066
  %1110 = vst.msk [vmem:[#allocation2 + $0xc0] sm:$0xff] %vm1097, %v1068
  %1111 = vst.msk [vmem:[#allocation2 + $0xd0] sm:$0xff] %vm1097, %v1070
  %1112 = vst.msk [vmem:[#allocation2 + $0xe0] sm:$0xff] %vm1097, %v1072
  %1113 = vst.msk [vmem:[#allocation2 + $0xf0] sm:$0xff] %vm1097, %v1074
  %1114 = vst.msk [vmem:[#allocation2 + $0x100] sm:$0xff] %vm1097, %v1076
  %1115 = vst.msk [vmem:[#allocation2 + $0x110] sm:$0xff] %vm1097, %v1078
  %vm1116 = vcmask 1044480
  %v1117 = vrot.slane %v132, 3
  %v1118 = vrot.slane %v133, 3
  %v1119 = vsel %vm1116, %v1117, %v1118
  %v1120 = vrot.slane %v134, 3
  %v1121 = vsel %vm1116, %v1118, %v1120
  %v1122 = vrot.slane %v135, 3
  %v1123 = vsel %vm1116, %v1120, %v1122
  %v1124 = vrot.slane %v136, 3
  %v1125 = vsel %vm1116, %v1122, %v1124
  %v1126 = vrot.slane %v137, 3
  %v1127 = vsel %vm1116, %v1124, %v1126
  %v1128 = vrot.slane %v138, 3
  %v1129 = vsel %vm1116, %v1126, %v1128
  %v1130 = vrot.slane %v139, 3
  %v1131 = vsel %vm1116, %v1128, %v1130
  %v1132 = vrot.slane %v140, 3
  %v1133 = vsel %vm1116, %v1130, %v1132
  %v1134 = vrot.slane %v141, 3
  %v1135 = vsel %vm1116, %v1132, %v1134
  %v1136 = vrot.slane %v142, 3
  %v1137 = vsel %vm1116, %v1134, %v1136
  %v1138 = vrot.slane %v143, 3
  %v1139 = vsel %vm1116, %v1136, %v1138
  %v1140 = vrot.slane %v144, 3
  %v1141 = vsel %vm1116, %v1138, %v1140
  %v1142 = vrot.slane %v145, 3
  %v1143 = vsel %vm1116, %v1140, %v1142
  %v1144 = vrot.slane %v146, 3
  %v1145 = vsel %vm1116, %v1142, %v1144
  %v1146 = vrot.slane %v147, 3
  %v1147 = vsel %vm1116, %v1144, %v1146
  %v1148 = vrot.slane %v525, 3
  %v1149 = vsel %vm1116, %v1146, %v1148
  %v1150 = vrot.slane %v878, 3
  %v1151 = vsel %vm1116, %v1148, %v1150
  %v1152 = vrot.slane %v879, 3
  %v1153 = vsel %vm1116, %v1150, %v1152
  %1172 = vst.msk [vmem:[#allocation2 + $0x8] sm:$0xff] %vm166, %v1119
  %1173 = vst.msk [vmem:[#allocation2 + $0x18] sm:$0xff] %vm166, %v1121
  %1174 = vst.msk [vmem:[#allocation2 + $0x28] sm:$0xff] %vm166, %v1123
  %1175 = vst.msk [vmem:[#allocation2 + $0x38] sm:$0xff] %vm166, %v1125
  %1176 = vst.msk [vmem:[#allocation2 + $0x48] sm:$0xff] %vm166, %v1127
  %1177 = vst.msk [vmem:[#allocation2 + $0x58] sm:$0xff] %vm166, %v1129
  %1178 = vst.msk [vmem:[#allocation2 + $0x68] sm:$0xff] %vm166, %v1131
  %1179 = vst.msk [vmem:[#allocation2 + $0x78] sm:$0xff] %vm166, %v1133
  %1180 = vst.msk [vmem:[#allocation2 + $0x88] sm:$0xff] %vm166, %v1135
  %1181 = vst.msk [vmem:[#allocation2 + $0x98] sm:$0xff] %vm166, %v1137
  %1182 = vst.msk [vmem:[#allocation2 + $0xa8] sm:$0xff] %vm166, %v1139
  %1183 = vst.msk [vmem:[#allocation2 + $0xb8] sm:$0xff] %vm166, %v1141
  %1184 = vst.msk [vmem:[#allocation2 + $0xc8] sm:$0xff] %vm166, %v1143
  %1185 = vst.msk [vmem:[#allocation2 + $0xd8] sm:$0xff] %vm166, %v1145
  %1186 = vst.msk [vmem:[#allocation2 + $0xe8] sm:$0xff] %vm166, %v1147
  %1187 = vst.msk [vmem:[#allocation2 + $0xf8] sm:$0xff] %vm166, %v1149
  %1188 = vst.msk [vmem:[#allocation2 + $0x108] sm:$0xff] %vm166, %v1151
  %1189 = vst.msk [vmem:[#allocation2 + $0x118] sm:$0xff] %vm166, %v1153
  %v1190 = vld [vmem:[#allocation2] sm:$0xff]
  %v1191 = vld [vmem:[#allocation2 + $0x8] sm:$0xff]
  %v1192 = vld [vmem:[#allocation2 + $0x10] sm:$0xff]
  %v1193 = vld [vmem:[#allocation2 + $0x18] sm:$0xff]
  %v1194 = vld [vmem:[#allocation2 + $0x20] sm:$0xff]
  %v1195 = vld [vmem:[#allocation2 + $0x28] sm:$0xff]
  %v1196 = vld [vmem:[#allocation2 + $0x30] sm:$0xff]
  %v1197 = vld [vmem:[#allocation2 + $0x38] sm:$0xff]
  %v1198 = vld [vmem:[#allocation2 + $0x40] sm:$0xff]
  %v1199 = vld [vmem:[#allocation2 + $0x48] sm:$0xff]
  %v1200 = vld [vmem:[#allocation2 + $0x50] sm:$0xff]
  %v1201 = vld [vmem:[#allocation2 + $0x58] sm:$0xff]
  %v1202 = vld [vmem:[#allocation2 + $0x60] sm:$0xff]
  %v1203 = vld [vmem:[#allocation2 + $0x68] sm:$0xff]
  %v1204 = vld [vmem:[#allocation2 + $0x70] sm:$0xff]
  %v1205 = vld [vmem:[#allocation2 + $0x78] sm:$0xff]
  %v1206 = vld [vmem:[#allocation2 + $0x80] sm:$0xff]
  %v1207 = vld [vmem:[#allocation2 + $0x88] sm:$0xff]
  %v1208 = vld [vmem:[#allocation2 + $0x90] sm:$0xff]
  %v1209 = vld [vmem:[#allocation2 + $0x98] sm:$0xff]
  %v1210 = vld [vmem:[#allocation2 + $0xa0] sm:$0xff]
  %v1211 = vld [vmem:[#allocation2 + $0xa8] sm:$0xff]
  %v1212 = vld [vmem:[#allocation2 + $0xb0] sm:$0xff]
  %v1213 = vld [vmem:[#allocation2 + $0xb8] sm:$0xff]
  %v1214 = vld [vmem:[#allocation2 + $0xc0] sm:$0xff]
  %v1215 = vld [vmem:[#allocation2 + $0xc8] sm:$0xff]
  %v1216 = vld [vmem:[#allocation2 + $0xd0] sm:$0xff]
  %v1217 = vld [vmem:[#allocation2 + $0xd8] sm:$0xff]
  %v1218 = vld [vmem:[#allocation2 + $0xe0] sm:$0xff]
  %v1219 = vld [vmem:[#allocation2 + $0xe8] sm:$0xff]
  %v1220 = vld [vmem:[#allocation2 + $0xf0] sm:$0xff]
  %v1221 = vld [vmem:[#allocation2 + $0xf8] sm:$0xff]
  %v1222 = vld [vmem:[#allocation2 + $0x100] sm:$0xff]
  %v1223 = vld [vmem:[#allocation2 + $0x108] sm:$0xff]
  %v1224 = vld [vmem:[#allocation2 + $0x110] sm:$0xff]
  %v1225 = vld [vmem:[#allocation2 + $0x118] sm:$0xff]
  %v1226 = vld [vmem:[%s1] sm:$0xf]
  %v1227 = vld [vmem:[%s1 + $0x4] sm:$0xf]
  %v1228 = vld [vmem:[%s1 + $0x8] sm:$0xf]
  %v1229 = vld [vmem:[%s1 + $0xc] sm:$0xf]
  %v1230 = vld [vmem:[%s1 + $0x10] sm:$0xf]
  %v1231 = vld [vmem:[%s1 + $0x14] sm:$0xf]
  %v1232 = vld [vmem:[%s1 + $0x18] sm:$0xf]
  %v1233 = vld [vmem:[%s1 + $0x1c] sm:$0xf]
  %v1234 = vld [vmem:[%s1 + $0x20] sm:$0xf]
  %v1235 = vld [vmem:[%s1 + $0x24] sm:$0xf]
  %v1236 = vld [vmem:[%s1 + $0x28] sm:$0xf]
  %v1237 = vld [vmem:[%s1 + $0x2c] sm:$0xf]
  %v1238 = vld [vmem:[%s1 + $0x30] sm:$0xf]
  %v1239 = vld [vmem:[%s1 + $0x34] sm:$0xf]
  %v1240 = vld [vmem:[%s1 + $0x38] sm:$0xf]
  %v1241 = vld [vmem:[%s1 + $0x3c] sm:$0xf]
  %v1242 = vld [vmem:[%s1 + $0x40] sm:$0xf]
  %v1243 = vld [vmem:[%s1 + $0x44] sm:$0xf]
  %v1262 = vunpack.c.l.b16 %v1226
  %v1263 = vunpack.c.l.b16 %v1227
  %v1264 = vunpack.c.l.b16 %v1228
  %v1265 = vunpack.c.l.b16 %v1229
  %v1266 = vunpack.c.l.b16 %v1230
  %v1267 = vunpack.c.l.b16 %v1231
  %v1268 = vunpack.c.l.b16 %v1232
  %v1269 = vunpack.c.l.b16 %v1233
  %v1270 = vunpack.c.l.b16 %v1234
  %v1271 = vunpack.c.l.b16 %v1235
  %v1272 = vunpack.c.l.b16 %v1236
  %v1273 = vunpack.c.l.b16 %v1237
  %v1274 = vunpack.c.l.b16 %v1238
  %v1275 = vunpack.c.l.b16 %v1239
  %v1276 = vunpack.c.l.b16 %v1240
  %v1277 = vunpack.c.l.b16 %v1241
  %v1278 = vunpack.c.l.b16 %v1242
  %v1279 = vunpack.c.l.b16 %v1243
  %v1280 = vpack.c.b16 %v1263, %v1262
  %v1281 = vpack.c.b16 %v1265, %v1264
  %v1282 = vpack.c.b16 %v1267, %v1266
  %v1283 = vpack.c.b16 %v1269, %v1268
  %v1284 = vpack.c.b16 %v1271, %v1270
  %v1285 = vpack.c.b16 %v1273, %v1272
  %v1286 = vpack.c.b16 %v1275, %v1274
  %v1287 = vpack.c.b16 %v1277, %v1276
  %v1288 = vpack.c.b16 %v1279, %v1278
  %v1299 = vsel %vm166, %v1191, 0
  %v1302 = vsel %vm166, %v1193, 0
  %v1305 = vsel %vm166, %v1195, 0
  %v1308 = vsel %vm166, %v1197, 0
  %v1311 = vsel %vm166, %v1199, 0
  %v1314 = vsel %vm166, %v1201, 0
  %v1317 = vsel %vm166, %v1203, 0
  %v1320 = vsel %vm166, %v1205, 0
  %v1323 = vsel %vm166, %v1207, 0
  %v1326 = vsel %vm166, %v1209, 0
  %v1329 = vsel %vm166, %v1211, 0
  %v1332 = vsel %vm166, %v1213, 0
  %v1335 = vsel %vm166, %v1215, 0
  %v1338 = vsel %vm166, %v1217, 0
  %v1341 = vsel %vm166, %v1219, 0
  %v1344 = vsel %vm166, %v1221, 0
  %v1347 = vsel %vm166, %v1223, 0
  %v1350 = vsel %vm166, %v1225, 0
  %1352 = vmatprep.subr.bf16.mxu0 0
  %1353 = vmatpush1.bf16.msra.mxu0 %v1280
  %1354 = vmatprep.subr.bf16.mxu0 0
  %1355 = vmatpush1.bf16.msra.mxu0 %v1281
  %1356 = vmatprep.subr.bf16.mxu0 0
  %1357 = vmatpush1.bf16.msra.mxu0 %v1282
  %1358 = vmatprep.subr.bf16.mxu0 0
  %1359 = vmatpush1.bf16.msra.mxu0 %v1283
  %1360 = vmatprep.subr.bf16.mxu0 0
  %1361 = vmatpush1.bf16.msra.mxu0 %v1284
  %1362 = vmatprep.subr.bf16.mxu0 0
  %1363 = vmatpush1.bf16.msra.mxu0 %v1285
  %1364 = vmatprep.subr.bf16.mxu0 0
  %1365 = vmatpush1.bf16.msra.mxu0 %v1286
  %1366 = vmatprep.subr.bf16.mxu0 0
  %1367 = vmatpush1.bf16.msra.mxu0 %v1287
  %1368 = vmatprep.subr.bf16.mxu0 0
  %1369 = vmatpush1.bf16.msra.mxu0 %v1288
  %1370 = vmatprep.subr.bf16.mxu0 0
  %1371 = vmatpush1.bf16.msra.mxu0 0
  %1372 = vmatprep.subr.bf16.mxu0 0
  %1373 = vmatpush1.bf16.msra.mxu0 0
  %1374 = vmatprep.subr.bf16.mxu0 0
  %1375 = vmatpush1.bf16.msra.mxu0 0
  %1376 = vmatprep.subr.bf16.mxu0 0
  %1377 = vmatpush1.bf16.msra.mxu0 0
  %1378 = vmatprep.subr.bf16.mxu0 0
  %1379 = vmatpush1.bf16.msra.mxu0 0
  %1380 = vmatprep.subr.bf16.mxu0 0
  %1381 = vmatpush1.bf16.msra.mxu0 0
  %1382 = vmatprep.subr.bf16.mxu0 0
  %1383 = vmatpush1.bf16.msra.mxu0 0
  %1384 = vmatprep.mubr.bf16.mxu0 %v1299
  %1385 = vmatmul.mubr.bf16.gmra.mrb[0].mxu0 %v1190
  %v1386 = vpop.f32.mrb[0].mxu0
  %v1387 = vadd.f32 0.0, %v1386
  %v1388 = vpop.f32.mrb[0].mxu0
  %v1389 = vpop.f32.mrb[0].mxu0
  %v1390 = vadd.f32 0.0, %v1389
  %v1391 = vpop.f32.mrb[0].mxu0
  %1392 = vmatprep.mubr.bf16.mxu0 %v1302
  %1393 = vmatmul.mubr.bf16.gmra.mrb[0].mxu0 %v1192
  %v1394 = vpop.f32.mrb[0].mxu0
  %v1395 = vadd.f32 0.0, %v1394
  %v1396 = vpop.f32.mrb[0].mxu0
  %v1397 = vpop.f32.mrb[0].mxu0
  %v1398 = vadd.f32 0.0, %v1397
  %v1399 = vpop.f32.mrb[0].mxu0
  %1400 = vmatprep.mubr.bf16.mxu0 %v1305
  %1401 = vmatmul.mubr.bf16.gmra.mrb[0].mxu0 %v1194
  %v1402 = vpop.f32.mrb[0].mxu0
  %v1403 = vadd.f32 0.0, %v1402
  %v1404 = vpop.f32.mrb[0].mxu0
  %v1405 = vpop.f32.mrb[0].mxu0
  %v1406 = vadd.f32 0.0, %v1405
  %v1407 = vpop.f32.mrb[0].mxu0
  %1408 = vmatprep.mubr.bf16.mxu0 %v1308
  %1409 = vmatmul.mubr.bf16.gmra.mrb[0].mxu0 %v1196
  %v1410 = vpop.f32.mrb[0].mxu0
  %v1411 = vadd.f32 0.0, %v1410
  %v1412 = vpop.f32.mrb[0].mxu0
  %v1413 = vpop.f32.mrb[0].mxu0
  %v1414 = vadd.f32 0.0, %v1413
  %v1415 = vpop.f32.mrb[0].mxu0
  %1416 = vmatprep.mubr.bf16.mxu0 %v1311
  %1417 = vmatmul.mubr.bf16.gmra.mrb[0].mxu0 %v1198
  %v1418 = vpop.f32.mrb[0].mxu0
  %v1419 = vadd.f32 0.0, %v1418
  %v1420 = vpop.f32.mrb[0].mxu0
  %v1421 = vpop.f32.mrb[0].mxu0
  %v1422 = vadd.f32 0.0, %v1421
  %v1423 = vpop.f32.mrb[0].mxu0
  %1424 = vmatprep.mubr.bf16.mxu0 %v1314
  %1425 = vmatmul.mubr.bf16.gmra.mrb[0].mxu0 %v1200
  %v1426 = vpop.f32.mrb[0].mxu0
  %v1427 = vadd.f32 0.0, %v1426
  %v1428 = vpop.f32.mrb[0].mxu0
  %v1429 = vpop.f32.mrb[0].mxu0
  %v1430 = vadd.f32 0.0, %v1429
  %v1431 = vpop.f32.mrb[0].mxu0
  %1432 = vmatprep.mubr.bf16.mxu0 %v1317
  %1433 = vmatmul.mubr.bf16.gmra.mrb[0].mxu0 %v1202
  %v1434 = vpop.f32.mrb[0].mxu0
  %v1435 = vadd.f32 0.0, %v1434
  %v1436 = vpop.f32.mrb[0].mxu0
  %v1437 = vpop.f32.mrb[0].mxu0
  %v1438 = vadd.f32 0.0, %v1437
  %v1439 = vpop.f32.mrb[0].mxu0
  %1440 = vmatprep.mubr.bf16.mxu0 %v1320
  %1441 = vmatmul.mubr.bf16.gmra.mrb[0].mxu0 %v1204
  %v1442 = vpop.f32.mrb[0].mxu0
  %v1443 = vadd.f32 0.0, %v1442
  %v1444 = vpop.f32.mrb[0].mxu0
  %v1445 = vpop.f32.mrb[0].mxu0
  %v1446 = vadd.f32 0.0, %v1445
  %v1447 = vpop.f32.mrb[0].mxu0
  %1448 = vmatprep.mubr.bf16.mxu0 %v1323
  %1449 = vmatmul.mubr.bf16.gmra.mrb[0].mxu0 %v1206
  %v1450 = vpop.f32.mrb[0].mxu0
  %v1451 = vadd.f32 0.0, %v1450
  %v1452 = vpop.f32.mrb[0].mxu0
  %v1453 = vpop.f32.mrb[0].mxu0
  %v1454 = vadd.f32 0.0, %v1453
  %v1455 = vpop.f32.mrb[0].mxu0
  %1456 = vmatprep.mubr.bf16.mxu0 %v1326
  %1457 = vmatmul.mubr.bf16.gmra.mrb[0].mxu0 %v1208
  %v1458 = vpop.f32.mrb[0].mxu0
  %v1459 = vadd.f32 0.0, %v1458
  %v1460 = vpop.f32.mrb[0].mxu0
  %v1461 = vpop.f32.mrb[0].mxu0
  %v1462 = vadd.f32 0.0, %v1461
  %v1463 = vpop.f32.mrb[0].mxu0
  %1464 = vmatprep.mubr.bf16.mxu0 %v1329
  %1465 = vmatmul.mubr.bf16.gmra.mrb[0].mxu0 %v1210
  %v1466 = vpop.f32.mrb[0].mxu0
  %v1467 = vadd.f32 0.0, %v1466
  %v1468 = vpop.f32.mrb[0].mxu0
  %v1469 = vpop.f32.mrb[0].mxu0
  %v1470 = vadd.f32 0.0, %v1469
  %v1471 = vpop.f32.mrb[0].mxu0
  %1472 = vmatprep.mubr.bf16.mxu0 %v1332
  %1473 = vmatmul.mubr.bf16.gmra.mrb[0].mxu0 %v1212
  %v1474 = vpop.f32.mrb[0].mxu0
  %v1475 = vadd.f32 0.0, %v1474
  %v1476 = vpop.f32.mrb[0].mxu0
  %v1477 = vpop.f32.mrb[0].mxu0
  %v1478 = vadd.f32 0.0, %v1477
  %v1479 = vpop.f32.mrb[0].mxu0
  %1480 = vmatprep.mubr.bf16.mxu0 %v1335
  %1481 = vmatmul.mubr.bf16.gmra.mrb[0].mxu0 %v1214
  %v1482 = vpop.f32.mrb[0].mxu0
  %v1483 = vadd.f32 0.0, %v1482
  %v1484 = vpop.f32.mrb[0].mxu0
  %v1485 = vpop.f32.mrb[0].mxu0
  %v1486 = vadd.f32 0.0, %v1485
  %v1487 = vpop.f32.mrb[0].mxu0
  %1488 = vmatprep.mubr.bf16.mxu0 %v1338
  %1489 = vmatmul.mubr.bf16.gmra.mrb[0].mxu0 %v1216
  %v1490 = vpop.f32.mrb[0].mxu0
  %v1491 = vadd.f32 0.0, %v1490
  %v1492 = vpop.f32.mrb[0].mxu0
  %v1493 = vpop.f32.mrb[0].mxu0
  %v1494 = vadd.f32 0.0, %v1493
  %v1495 = vpop.f32.mrb[0].mxu0
  %1496 = vmatprep.mubr.bf16.mxu0 %v1341
  %1497 = vmatmul.mubr.bf16.gmra.mrb[0].mxu0 %v1218
  %v1498 = vpop.f32.mrb[0].mxu0
  %v1499 = vadd.f32 0.0, %v1498
  %v1500 = vpop.f32.mrb[0].mxu0
  %v1501 = vpop.f32.mrb[0].mxu0
  %v1502 = vadd.f32 0.0, %v1501
  %v1503 = vpop.f32.mrb[0].mxu0
  %1504 = vmatprep.mubr.bf16.mxu0 %v1344
  %1505 = vmatmul.mubr.bf16.gmra.mrb[0].mxu0 %v1220
  %v1506 = vpop.f32.mrb[0].mxu0
  %v1507 = vadd.f32 0.0, %v1506
  %v1508 = vpop.f32.mrb[0].mxu0
  %v1509 = vpop.f32.mrb[0].mxu0
  %v1510 = vadd.f32 0.0, %v1509
  %v1511 = vpop.f32.mrb[0].mxu0
  %1512 = vmatprep.mubr.bf16.mxu0 %v1347
  %1513 = vmatmul.mubr.bf16.gmra.mrb[0].mxu0 %v1222
  %v1514 = vpop.f32.mrb[0].mxu0
  %v1515 = vadd.f32 0.0, %v1514
  %v1516 = vpop.f32.mrb[0].mxu0
  %v1517 = vpop.f32.mrb[0].mxu0
  %v1518 = vadd.f32 0.0, %v1517
  %v1519 = vpop.f32.mrb[0].mxu0
  %1520 = vmatprep.mubr.bf16.mxu0 %v1350
  %1521 = vmatmul.mubr.bf16.gmra.mrb[0].mxu0 %v1224
  %v1522 = vpop.f32.mrb[0].mxu0
  %v1523 = vadd.f32 0.0, %v1522
  %v1524 = vpop.f32.mrb[0].mxu0
  %v1525 = vpop.f32.mrb[0].mxu0
  %v1526 = vadd.f32 0.0, %v1525
  %v1527 = vpop.f32.mrb[0].mxu0
  %1528 = vdwg.mxu0
  %1529 = vst.msk [vmem:[%s2] sm:$0xff] %vm166, %v1387
  %1530 = vst.msk [vmem:[%s2 + $0x8] sm:$0xff] %vm166, %v1390
  %1531 = vst.msk [vmem:[%s2 + $0x10] sm:$0xff] %vm166, %v1395
  %1532 = vst.msk [vmem:[%s2 + $0x18] sm:$0xff] %vm166, %v1398
  %1533 = vst.msk [vmem:[%s2 + $0x20] sm:$0xff] %vm166, %v1403
  %1534 = vst.msk [vmem:[%s2 + $0x28] sm:$0xff] %vm166, %v1406
  %1535 = vst.msk [vmem:[%s2 + $0x30] sm:$0xff] %vm166, %v1411
  %1536 = vst.msk [vmem:[%s2 + $0x38] sm:$0xff] %vm166, %v1414
  %1537 = vst.msk [vmem:[%s2 + $0x40] sm:$0xff] %vm166, %v1419
  %1538 = vst.msk [vmem:[%s2 + $0x48] sm:$0xff] %vm166, %v1422
  %1539 = vst.msk [vmem:[%s2 + $0x50] sm:$0xff] %vm166, %v1427
  %1540 = vst.msk [vmem:[%s2 + $0x58] sm:$0xff] %vm166, %v1430
  %1541 = vst.msk [vmem:[%s2 + $0x60] sm:$0xff] %vm166, %v1435
  %1542 = vst.msk [vmem:[%s2 + $0x68] sm:$0xff] %vm166, %v1438
  %1543 = vst.msk [vmem:[%s2 + $0x70] sm:$0xff] %vm166, %v1443
  %1544 = vst.msk [vmem:[%s2 + $0x78] sm:$0xff] %vm166, %v1446
  %1545 = vst.msk [vmem:[%s2 + $0x80] sm:$0xff] %vm166, %v1451
  %1546 = vst.msk [vmem:[%s2 + $0x88] sm:$0xff] %vm166, %v1454
  %1547 = vst.msk [vmem:[%s2 + $0x90] sm:$0xff] %vm166, %v1459
  %1548 = vst.msk [vmem:[%s2 + $0x98] sm:$0xff] %vm166, %v1462
  %1549 = vst.msk [vmem:[%s2 + $0xa0] sm:$0xff] %vm166, %v1467
  %1550 = vst.msk [vmem:[%s2 + $0xa8] sm:$0xff] %vm166, %v1470
  %1551 = vst.msk [vmem:[%s2 + $0xb0] sm:$0xff] %vm166, %v1475
  %1552 = vst.msk [vmem:[%s2 + $0xb8] sm:$0xff] %vm166, %v1478
  %1553 = vst.msk [vmem:[%s2 + $0xc0] sm:$0xff] %vm166, %v1483
  %1554 = vst.msk [vmem:[%s2 + $0xc8] sm:$0xff] %vm166, %v1486
  %1555 = vst.msk [vmem:[%s2 + $0xd0] sm:$0xff] %vm166, %v1491
  %1556 = vst.msk [vmem:[%s2 + $0xd8] sm:$0xff] %vm166, %v1494
  %1557 = vst.msk [vmem:[%s2 + $0xe0] sm:$0xff] %vm166, %v1499
  %1558 = vst.msk [vmem:[%s2 + $0xe8] sm:$0xff] %vm166, %v1502
  %1559 = vst.msk [vmem:[%s2 + $0xf0] sm:$0xff] %vm166, %v1507
  %1560 = vst.msk [vmem:[%s2 + $0xf8] sm:$0xff] %vm166, %v1510
  %1561 = vst.msk [vmem:[%s2 + $0x100] sm:$0xff] %vm166, %v1515
  %1562 = vst.msk [vmem:[%s2 + $0x108] sm:$0xff] %vm166, %v1518
  %1563 = vst.msk [vmem:[%s2 + $0x110] sm:$0xff] %vm166, %v1523
  %1564 = vst.msk [vmem:[%s2 + $0x118] sm:$0xff] %vm166, %v1526
  // Predicated region
  $region10: #{tpu_custom_call.1} parent=0 // pred_check
    _
  $region11: #{tpu_custom_call.1} parent=0 // pred_check_branch
    %1566 = sbr.rel (0) target = $region13
  $region12: #{tpu_custom_call.1} parent=0 // pred_region
    _
  $region13: #{tpu_custom_call.1} parent=0 // pred_fallthru
    _
  // Predicated region
  $region14: #{tpu_custom_call.1} parent=0 // pred_check
    _
  $region15: #{tpu_custom_call.1} parent=0 // pred_check_branch
    %1568 = sbr.rel (0) target = $region17
  $region16: #{tpu_custom_call.1} parent=0 // pred_region
    _
  $region17: #{tpu_custom_call.1} parent=0 // pred_fallthru
    _

</llo_original>
